<compile_context>
chip_gen: v5e
topology: v5e:2x2
jax: 0.10.0
libtpu: 0.0.40
codegen_flags: <defaults>
</compile_context>

<pallas_src>
import functools

import jax
import jax.numpy as jnp
from jax.experimental import pallas as pl
from jax.experimental.pallas import tpu as pltpu


# ----------------------------- activations ---------------------------------
_ACTS = {
    "tanh": jnp.tanh,
    # nn.GELU default is the exact (erf) form.
    "gelu": functools.partial(jax.nn.gelu, approximate=False),
    "mish": lambda x: x * jnp.tanh(jax.nn.softplus(x)),
    "softplus": jax.nn.softplus,
    "relu": jax.nn.relu,
    "sigmoid": jax.nn.sigmoid,
}


def _get_act(act):
    # The PyTorch module's final `else` branch falls back to Tanh for unknown
    # strings, so (matching the module's semantics) we do the same instead of
    # raising.
    return _ACTS.get(act, jnp.tanh)


def _round_up(v, m):
    return -(-v // m) * m


# ------------------------------- kernel ------------------------------------
def _wave_kernel(x_ref, w_in_ref, b_in_ref, wh_ref, bh_ref, w_out_ref, b_out_ref,
                 o_ref, *, num_layers, act_fn):
    # x tile: [3, block_m]; all activations: [H_pad, block_m] (batch on lanes).
    #
    # Padding invariant: the padded hidden rows/cols of every weight and of
    # w_out are ZERO, so anything living in padded sublanes of `h` (which can
    # be nonzero after activations with act(0) != 0, e.g. softplus/sigmoid)
    # never reaches a valid output.  Do not add residuals / normalization /
    # non-zero-padded params without revisiting this.
    x = x_ref[...]
    w_in = w_in_ref[...]                                  # [H_pad, 3], f32

    # Input projection (K=3): three broadcasted VPU FMAs — no MXU pass needed.
    h = (w_in[:, 0:1] * x[0:1, :]
         + w_in[:, 1:2] * x[1:2, :]
         + w_in[:, 2:3] * x[2:3, :]
         + b_in_ref[...])                                 # [H_pad, block_m], f32

    # Hidden layers: h = act(W @ h + b).  MXU matmuls with bf16 (default) or
    # f32 operands and f32 accumulation; activations / bias adds stay f32 so
    # the VPU/EUP never see sub-32-bit data (important on v5e).
    w_dtype = wh_ref.dtype
    for l in range(num_layers):                           # static -> unrolled
        h = act_fn(jnp.dot(wh_ref[l], h.astype(w_dtype),
                           preferred_element_type=jnp.float32) + bh_ref[l])

    # Output projection (H_pad -> 1): VPU multiply + sublane reduction; an
    # N=1 MXU matmul would waste 127/128 of the result lanes.  Store is a
    # lane-dense [1, block_m] tile (unmasked vst).
    o_ref[...] = (jnp.sum(w_out_ref[...] * h, axis=0, keepdims=True)
                  + b_out_ref[...])


# --------------------------- parameter prep ---------------------------------
def prepare_params(params, *, h_pad=None, hidden_weight_dtype=jnp.bfloat16):
    """Zero-pad the hidden width to a TPU-friendly size, reshape biases for the
    transposed (feature-on-sublane, batch-on-lane) layout, and cast the hidden
    weights to `hidden_weight_dtype` (bf16 by default — MXU operands only).
    Padded weight rows/columns are zero, so valid outputs are unchanged."""
    w_in, b_in = params["w_in"], params["b_in"]           # [H, 3], [H]
    w_h, b_h = params["w_h"], params["b_h"]               # [L, H, H], [L, H]
    w_out, b_out = params["w_out"], params["b_out"]       # [1, H], [1]
    hidden = w_in.shape[0]
    if h_pad is None:
        # bf16 weights pack 16 rows per sublane pair -> pad to 16 (50 -> 64);
        # f32 weights only need 8 (50 -> 56), trimming EUP/VPU work per layer.
        mult = 16 if jnp.dtype(hidden_weight_dtype).itemsize < 4 else 8
        h_pad = _round_up(max(hidden, mult), mult)
    p = h_pad - hidden
    return {
        "w_in": jnp.pad(w_in, ((0, p), (0, 0))),                          # [Hp, 3]
        "b_in": jnp.pad(b_in, ((0, p),))[:, None],                        # [Hp, 1]
        "w_h": jnp.pad(w_h, ((0, 0), (0, p), (0, p))).astype(hidden_weight_dtype),
        "b_h": jnp.pad(b_h, ((0, 0), (0, p)))[:, :, None],                # [L, Hp, 1]
        "w_out": jnp.pad(w_out, ((0, 0), (0, p))).T,                      # [Hp, 1]
        "b_out": b_out[:, None],                                          # [1, 1]
    }


# ------------------------------- wrapper ------------------------------------
def _wave_apply(x, kp, *, act="tanh", block_m=2048):
    """Run the Wave forward pass with a single Pallas kernel.

    x:  [N, 3] float32 (any N — padded internally to a multiple of block_m)
    kp: kernel-layout params from prepare_params().
    """
    n, in_dim = x.shape
    if in_dim != 3:
        raise ValueError(f"Wave expects 3 input features, got {in_dim}")

    w_in, b_in = kp["w_in"], kp["b_in"]
    w_h, b_h = kp["w_h"], kp["b_h"]
    w_out, b_out = kp["w_out"], kp["b_out"]
    num_layers, h_pad, _ = w_h.shape

    # Tile the batch along the lane axis.
    block_m = _round_up(max(block_m, 128), 128)
    block_m = min(block_m, _round_up(n, 128))             # don't over-pad small N
    if n >= 256:
        # Keep >= 2 grid steps so dimension_semantics=("parallel",) can shard
        # the grid across both v7x TensorCores (no effect on v5e/v6e).
        block_m = min(block_m, _round_up(-(-n // 2), 128))
    n_pad = _round_up(n, block_m)

    x_t = x.T                                             # [3, N]
    if n_pad != n:
        x_t = jnp.pad(x_t, ((0, 0), (0, n_pad - n)))
    grid = (n_pad // block_m,)

    kernel = functools.partial(
        _wave_kernel, num_layers=num_layers, act_fn=_get_act(act))

    # Advisory cost estimate so XLA schedules surrounding ops sensibly.
    param_bytes = sum(int(a.size) * jnp.dtype(a.dtype).itemsize
                      for a in (w_in, b_in, w_h, b_h, w_out, b_out))
    cost = pl.CostEstimate(
        flops=int(2 * (num_layers * h_pad * h_pad + (in_dim + 1) * h_pad) * n_pad),
        transcendentals=int(num_layers * h_pad * n_pad),
        bytes_accessed=int(4 * (in_dim + 1) * n_pad + param_bytes),
    )

    out_t = pl.pallas_call(
        kernel,
        out_shape=jax.ShapeDtypeStruct((1, n_pad), jnp.float32),
        grid_spec=pltpu.PrefetchScalarGridSpec(
            num_scalar_prefetch=0,
            grid=grid,
            in_specs=[
                # batch tile of points, batch on the lane axis
                pl.BlockSpec((in_dim, block_m), lambda i: (0, i)),
                # parameters: full arrays, resident for every grid step
                pl.BlockSpec((h_pad, in_dim), lambda i: (0, 0)),            # w_in
                pl.BlockSpec((h_pad, 1), lambda i: (0, 0)),                 # b_in
                pl.BlockSpec((num_layers, h_pad, h_pad), lambda i: (0, 0, 0)),  # w_h
                pl.BlockSpec((num_layers, h_pad, 1), lambda i: (0, 0, 0)),      # b_h
                pl.BlockSpec((h_pad, 1), lambda i: (0, 0)),                 # w_out
                pl.BlockSpec((1, 1), lambda i: (0, 0)),                     # b_out
            ],
            # lane-dense output tile [1, block_m]
            out_specs=pl.BlockSpec((1, block_m), lambda i: (0, i)),
        ),
        compiler_params=pltpu.CompilerParams(
            dimension_semantics=("parallel",)),   # shards grid across v7x TCs
        cost_estimate=cost,
    )(x_t, w_in, b_in, w_h, b_h, w_out, b_out)

    return out_t[:, :n].T                                 # [N, 1]


def make_wave_forward(params, *, act="tanh", block_m=2048,
                      hidden_weight_dtype=jnp.bfloat16):
    """Prepare (pad / transpose / cast) the parameters ONCE and return a jitted
    forward function x -> y.  Use this in training/eval loops so the parameter
    prep and the [N,3]->[3,N] transpose plumbing are folded by XLA instead of
    being re-emitted every call."""
    kp = prepare_params(params, hidden_weight_dtype=hidden_weight_dtype)
    apply_fn = jax.jit(functools.partial(_wave_apply, act=act, block_m=block_m))

    def fwd(x):
        return apply_fn(x, kp)

    return fwd


def wave_forward(x, params, *, act="tanh", block_m=2048,
                 hidden_weight_dtype=jnp.bfloat16):
    """One-off convenience wrapper (prepares params per call)."""
    kp = prepare_params(params, hidden_weight_dtype=hidden_weight_dtype)
    return _wave_apply(x, kp, act=act, block_m=block_m)


# --------------------------- parameter init ---------------------------------
def init_wave_params(key, *, layer=7, neurons=50, in_dim=3, out_dim=1):
    """PyTorch nn.Linear-style init; weights stored [out_features, in_features]."""
    keys = jax.random.split(key, 2 * (layer + 2))

    def linear(kw, kb, fan_in, fan_out):
        bound = 1.0 / jnp.sqrt(jnp.float32(fan_in))
        w = jax.random.uniform(kw, (fan_out, fan_in), jnp.float32, -bound, bound)
        b = jax.random.uniform(kb, (fan_out,), jnp.float32, -bound, bound)
        return w, b

    w_in, b_in = linear(keys[0], keys[1], in_dim, neurons)
    w_hs, b_hs = [], []
    for l in range(layer):
        w, b = linear(keys[2 + 2 * l], keys[3 + 2 * l], neurons, neurons)
        w_hs.append(w)
        b_hs.append(b)
    w_out, b_out = linear(keys[2 + 2 * layer], keys[3 + 2 * layer], neurons, out_dim)

    return {"w_in": w_in, "b_in": b_in,
            "w_h": jnp.stack(w_hs, 0), "b_h": jnp.stack(b_hs, 0),
            "w_out": w_out, "b_out": b_out}


# --------------------------- pure-JAX reference ------------------------------
def wave_reference(x, params, *, act="tanh", hidden_weight_dtype=jnp.float32):
    """Pure-JAX reference in the PyTorch layout.  The in/out projections are
    explicit broadcast/reduce ops (mathematically identical to the Linear
    matmuls, exact f32 like the kernel's VPU paths); hidden layers use dots
    with the same operand dtype / f32 accumulation as the kernel's MXU dots."""
    act_fn = _get_act(act)
    w_in, b_in = params["w_in"], params["b_in"]
    w_h, b_h = params["w_h"], params["b_h"]
    w_out, b_out = params["w_out"], params["b_out"]
    h = (x[:, 0:1] * w_in[:, 0] + x[:, 1:2] * w_in[:, 1]
         + x[:, 2:3] * w_in[:, 2] + b_in)                 # [N, H]
    for l in range(w_h.shape[0]):
        h = act_fn(jnp.dot(h.astype(hidden_weight_dtype),
                           w_h[l].astype(hidden_weight_dtype).T,
                           preferred_element_type=jnp.float32) + b_h[l])
    return jnp.sum(h * w_out[0], axis=-1, keepdims=True) + b_out


# --------------------------------- main --------------------------------------
if __name__ == "__main__":
    key = jax.random.PRNGKey(0)
    k_params, k_x = jax.random.split(key)

    LAYERS, NEURONS, ACT = 7, 50, "tanh"   # module defaults
    N = 512                                # block_m auto-caps -> grid of 2

    params = init_wave_params(k_params, layer=LAYERS, neurons=NEURONS)
    x = jax.random.normal(k_x, (N, 3), dtype=jnp.float32)   # (x, y, t) points

    # --- default bf16 MXU-operand path (recommended on v5e/v6e/v7x) ---------
    fwd_bf16 = make_wave_forward(params, act=ACT)            # bf16 hidden weights
    out_bf16 = jax.block_until_ready(fwd_bf16(x))
    ref_bf16 = wave_reference(x, params, act=ACT, hidden_weight_dtype=jnp.bfloat16)
    assert out_bf16.shape == (N, 1)
    # Same bf16 weight rounding on both sides; residual diffs come from
    # accumulation order / tanh implementation -> loosened tolerance.
    assert jnp.allclose(out_bf16, ref_bf16, atol=5e-3, rtol=5e-3), \
        "bf16 path mismatch vs reference"

    # --- f32-weight path (H padded to 56) with a tight numerical check ------
    fwd_f32 = make_wave_forward(params, act=ACT, hidden_weight_dtype=jnp.float32)
    out_f32 = jax.block_until_ready(fwd_f32(x))
    ref_f32 = wave_reference(x, params, act=ACT)
    assert jnp.allclose(out_f32, ref_f32, atol=1e-4, rtol=1e-4), \
        "f32 path mismatch vs reference"

    print("KERNEL_OK")
</pallas_src>

<mosaic_0001>
module attributes {stable_mosaic.version = 11 : i64} {
  func.func @_wave_kernel(%arg0: i32, %arg1: memref<3x256xf32, #tpu.memory_space<vmem>>, %arg2: memref<64x3xf32, #tpu.memory_space<vmem>>, %arg3: memref<64x1xf32, #tpu.memory_space<vmem>>, %arg4: memref<7x64x64xbf16, #tpu.memory_space<vmem>>, %arg5: memref<7x64x1xf32, #tpu.memory_space<vmem>>, %arg6: memref<64x1xf32, #tpu.memory_space<vmem>>, %arg7: memref<1x1xf32, #tpu.memory_space<vmem>>, %arg8: memref<1x256xf32, #tpu.memory_space<vmem>>) attributes {dimension_semantics = [#tpu.dimension_semantics<parallel>], iteration_bounds = array<i64: 2>, scalar_prefetch = 0 : i64, scratch_operands = 0 : i64, tpu.core_type = #tpu.core_type<tc>, window_params = [{transform_indices = @transform_0, window_bounds = array<i64: 3, 256>}, {pipeline_mode = #tpu.pipeline_mode<synchronous>, transform_indices = @transform_1, window_bounds = array<i64: 64, 3>}, {pipeline_mode = #tpu.pipeline_mode<synchronous>, transform_indices = @transform_2, window_bounds = array<i64: 64, 1>}, {pipeline_mode = #tpu.pipeline_mode<synchronous>, transform_indices = @transform_3, window_bounds = array<i64: 7, 64, 64>}, {pipeline_mode = #tpu.pipeline_mode<synchronous>, transform_indices = @transform_4, window_bounds = array<i64: 7, 64, 1>}, {pipeline_mode = #tpu.pipeline_mode<synchronous>, transform_indices = @transform_5, window_bounds = array<i64: 64, 1>}, {pipeline_mode = #tpu.pipeline_mode<synchronous>, transform_indices = @transform_6, window_bounds = array<i64: 1, 1>}, {transform_indices = @transform_7, window_bounds = array<i64: 1, 256>}]} {
    %c0 = arith.constant 0 : index
    %c0_0 = arith.constant 0 : index
    %0 = vector.load %arg1[%c0, %c0_0] : memref<3x256xf32, #tpu.memory_space<vmem>>, vector<3x256xf32>
    %c0_1 = arith.constant 0 : index
    %c0_2 = arith.constant 0 : index
    %1 = vector.load %arg2[%c0_1, %c0_2] : memref<64x3xf32, #tpu.memory_space<vmem>>, vector<64x3xf32>
    %2 = vector.extract_strided_slice %1 {offsets = [0, 0], sizes = [64, 1], strides = [1, 1]} : vector<64x3xf32> to vector<64x1xf32>
    %3 = vector.extract_strided_slice %0 {offsets = [0, 0], sizes = [1, 256], strides = [1, 1]} : vector<3x256xf32> to vector<1x256xf32>
    %4 = vector.broadcast %2 : vector<64x1xf32> to vector<64x256xf32>
    %5 = vector.broadcast %3 : vector<1x256xf32> to vector<64x256xf32>
    %6 = arith.mulf %4, %5 : vector<64x256xf32>
    %7 = vector.extract_strided_slice %1 {offsets = [0, 1], sizes = [64, 1], strides = [1, 1]} : vector<64x3xf32> to vector<64x1xf32>
    %8 = vector.extract_strided_slice %0 {offsets = [1, 0], sizes = [1, 256], strides = [1, 1]} : vector<3x256xf32> to vector<1x256xf32>
    %9 = vector.broadcast %7 : vector<64x1xf32> to vector<64x256xf32>
    %10 = vector.broadcast %8 : vector<1x256xf32> to vector<64x256xf32>
    %11 = arith.mulf %9, %10 : vector<64x256xf32>
    %12 = arith.addf %6, %11 : vector<64x256xf32>
    %13 = vector.extract_strided_slice %1 {offsets = [0, 2], sizes = [64, 1], strides = [1, 1]} : vector<64x3xf32> to vector<64x1xf32>
    %14 = vector.extract_strided_slice %0 {offsets = [2, 0], sizes = [1, 256], strides = [1, 1]} : vector<3x256xf32> to vector<1x256xf32>
    %15 = vector.broadcast %13 : vector<64x1xf32> to vector<64x256xf32>
    %16 = vector.broadcast %14 : vector<1x256xf32> to vector<64x256xf32>
    %17 = arith.mulf %15, %16 : vector<64x256xf32>
    %18 = arith.addf %12, %17 : vector<64x256xf32>
    %c0_3 = arith.constant 0 : index
    %c0_4 = arith.constant 0 : index
    %19 = vector.load %arg3[%c0_3, %c0_4] : memref<64x1xf32, #tpu.memory_space<vmem>>, vector<64x1xf32>
    %20 = vector.broadcast %19 : vector<64x1xf32> to vector<64x256xf32>
    %21 = arith.addf %18, %20 : vector<64x256xf32>
    %c0_5 = arith.constant 0 : index
    %c0_6 = arith.constant 0 : index
    %c0_7 = arith.constant 0 : index
    %22 = vector.load %arg4[%c0_5, %c0_6, %c0_7] : memref<7x64x64xbf16, #tpu.memory_space<vmem>>, vector<1x64x64xbf16>
    %23 = vector.shape_cast %22 : vector<1x64x64xbf16> to vector<64x64xbf16>
    %24 = arith.truncf %21 : vector<64x256xf32> to vector<64x256xbf16>
    %cst = arith.constant dense<0.000000e+00> : vector<64x256xf32>
    %25 = tpu.matmul %23, %24, %cst {dimension_numbers = #tpu.dot_dimension_numbers<[1], [0], [0], [1], [0, 0, 1, 1], [], []>} : vector<64x64xbf16>, vector<64x256xbf16>, vector<64x256xf32> -> vector<64x256xf32>
    %c0_8 = arith.constant 0 : index
    %c0_9 = arith.constant 0 : index
    %c0_10 = arith.constant 0 : index
    %26 = vector.load %arg5[%c0_8, %c0_9, %c0_10] : memref<7x64x1xf32, #tpu.memory_space<vmem>>, vector<1x64x1xf32>
    %27 = vector.shape_cast %26 : vector<1x64x1xf32> to vector<64x1xf32>
    %28 = vector.broadcast %27 : vector<64x1xf32> to vector<64x256xf32>
    %29 = arith.addf %25, %28 : vector<64x256xf32>
    %30 = math.tanh %29 : vector<64x256xf32>
    %c1 = arith.constant 1 : index
    %c0_11 = arith.constant 0 : index
    %c0_12 = arith.constant 0 : index
    %31 = vector.load %arg4[%c1, %c0_11, %c0_12] : memref<7x64x64xbf16, #tpu.memory_space<vmem>>, vector<1x64x64xbf16>
    %32 = vector.shape_cast %31 : vector<1x64x64xbf16> to vector<64x64xbf16>
    %33 = arith.truncf %30 : vector<64x256xf32> to vector<64x256xbf16>
    %cst_13 = arith.constant dense<0.000000e+00> : vector<64x256xf32>
    %34 = tpu.matmul %32, %33, %cst_13 {dimension_numbers = #tpu.dot_dimension_numbers<[1], [0], [0], [1], [0, 0, 1, 1], [], []>} : vector<64x64xbf16>, vector<64x256xbf16>, vector<64x256xf32> -> vector<64x256xf32>
    %c1_14 = arith.constant 1 : index
    %c0_15 = arith.constant 0 : index
    %c0_16 = arith.constant 0 : index
    %35 = vector.load %arg5[%c1_14, %c0_15, %c0_16] : memref<7x64x1xf32, #tpu.memory_space<vmem>>, vector<1x64x1xf32>
    %36 = vector.shape_cast %35 : vector<1x64x1xf32> to vector<64x1xf32>
    %37 = vector.broadcast %36 : vector<64x1xf32> to vector<64x256xf32>
    %38 = arith.addf %34, %37 : vector<64x256xf32>
    %39 = math.tanh %38 : vector<64x256xf32>
    %c2 = arith.constant 2 : index
    %c0_17 = arith.constant 0 : index
    %c0_18 = arith.constant 0 : index
    %40 = vector.load %arg4[%c2, %c0_17, %c0_18] : memref<7x64x64xbf16, #tpu.memory_space<vmem>>, vector<1x64x64xbf16>
    %41 = vector.shape_cast %40 : vector<1x64x64xbf16> to vector<64x64xbf16>
    %42 = arith.truncf %39 : vector<64x256xf32> to vector<64x256xbf16>
    %cst_19 = arith.constant dense<0.000000e+00> : vector<64x256xf32>
    %43 = tpu.matmul %41, %42, %cst_19 {dimension_numbers = #tpu.dot_dimension_numbers<[1], [0], [0], [1], [0, 0, 1, 1], [], []>} : vector<64x64xbf16>, vector<64x256xbf16>, vector<64x256xf32> -> vector<64x256xf32>
    %c2_20 = arith.constant 2 : index
    %c0_21 = arith.constant 0 : index
    %c0_22 = arith.constant 0 : index
    %44 = vector.load %arg5[%c2_20, %c0_21, %c0_22] : memref<7x64x1xf32, #tpu.memory_space<vmem>>, vector<1x64x1xf32>
    %45 = vector.shape_cast %44 : vector<1x64x1xf32> to vector<64x1xf32>
    %46 = vector.broadcast %45 : vector<64x1xf32> to vector<64x256xf32>
    %47 = arith.addf %43, %46 : vector<64x256xf32>
    %48 = math.tanh %47 : vector<64x256xf32>
    %c3 = arith.constant 3 : index
    %c0_23 = arith.constant 0 : index
    %c0_24 = arith.constant 0 : index
    %49 = vector.load %arg4[%c3, %c0_23, %c0_24] : memref<7x64x64xbf16, #tpu.memory_space<vmem>>, vector<1x64x64xbf16>
    %50 = vector.shape_cast %49 : vector<1x64x64xbf16> to vector<64x64xbf16>
    %51 = arith.truncf %48 : vector<64x256xf32> to vector<64x256xbf16>
    %cst_25 = arith.constant dense<0.000000e+00> : vector<64x256xf32>
    %52 = tpu.matmul %50, %51, %cst_25 {dimension_numbers = #tpu.dot_dimension_numbers<[1], [0], [0], [1], [0, 0, 1, 1], [], []>} : vector<64x64xbf16>, vector<64x256xbf16>, vector<64x256xf32> -> vector<64x256xf32>
    %c3_26 = arith.constant 3 : index
    %c0_27 = arith.constant 0 : index
    %c0_28 = arith.constant 0 : index
    %53 = vector.load %arg5[%c3_26, %c0_27, %c0_28] : memref<7x64x1xf32, #tpu.memory_space<vmem>>, vector<1x64x1xf32>
    %54 = vector.shape_cast %53 : vector<1x64x1xf32> to vector<64x1xf32>
    %55 = vector.broadcast %54 : vector<64x1xf32> to vector<64x256xf32>
    %56 = arith.addf %52, %55 : vector<64x256xf32>
    %57 = math.tanh %56 : vector<64x256xf32>
    %c4 = arith.constant 4 : index
    %c0_29 = arith.constant 0 : index
    %c0_30 = arith.constant 0 : index
    %58 = vector.load %arg4[%c4, %c0_29, %c0_30] : memref<7x64x64xbf16, #tpu.memory_space<vmem>>, vector<1x64x64xbf16>
    %59 = vector.shape_cast %58 : vector<1x64x64xbf16> to vector<64x64xbf16>
    %60 = arith.truncf %57 : vector<64x256xf32> to vector<64x256xbf16>
    %cst_31 = arith.constant dense<0.000000e+00> : vector<64x256xf32>
    %61 = tpu.matmul %59, %60, %cst_31 {dimension_numbers = #tpu.dot_dimension_numbers<[1], [0], [0], [1], [0, 0, 1, 1], [], []>} : vector<64x64xbf16>, vector<64x256xbf16>, vector<64x256xf32> -> vector<64x256xf32>
    %c4_32 = arith.constant 4 : index
    %c0_33 = arith.constant 0 : index
    %c0_34 = arith.constant 0 : index
    %62 = vector.load %arg5[%c4_32, %c0_33, %c0_34] : memref<7x64x1xf32, #tpu.memory_space<vmem>>, vector<1x64x1xf32>
    %63 = vector.shape_cast %62 : vector<1x64x1xf32> to vector<64x1xf32>
    %64 = vector.broadcast %63 : vector<64x1xf32> to vector<64x256xf32>
    %65 = arith.addf %61, %64 : vector<64x256xf32>
    %66 = math.tanh %65 : vector<64x256xf32>
    %c5 = arith.constant 5 : index
    %c0_35 = arith.constant 0 : index
    %c0_36 = arith.constant 0 : index
    %67 = vector.load %arg4[%c5, %c0_35, %c0_36] : memref<7x64x64xbf16, #tpu.memory_space<vmem>>, vector<1x64x64xbf16>
    %68 = vector.shape_cast %67 : vector<1x64x64xbf16> to vector<64x64xbf16>
    %69 = arith.truncf %66 : vector<64x256xf32> to vector<64x256xbf16>
    %cst_37 = arith.constant dense<0.000000e+00> : vector<64x256xf32>
    %70 = tpu.matmul %68, %69, %cst_37 {dimension_numbers = #tpu.dot_dimension_numbers<[1], [0], [0], [1], [0, 0, 1, 1], [], []>} : vector<64x64xbf16>, vector<64x256xbf16>, vector<64x256xf32> -> vector<64x256xf32>
    %c5_38 = arith.constant 5 : index
    %c0_39 = arith.constant 0 : index
    %c0_40 = arith.constant 0 : index
    %71 = vector.load %arg5[%c5_38, %c0_39, %c0_40] : memref<7x64x1xf32, #tpu.memory_space<vmem>>, vector<1x64x1xf32>
    %72 = vector.shape_cast %71 : vector<1x64x1xf32> to vector<64x1xf32>
    %73 = vector.broadcast %72 : vector<64x1xf32> to vector<64x256xf32>
    %74 = arith.addf %70, %73 : vector<64x256xf32>
    %75 = math.tanh %74 : vector<64x256xf32>
    %c6 = arith.constant 6 : index
    %c0_41 = arith.constant 0 : index
    %c0_42 = arith.constant 0 : index
    %76 = vector.load %arg4[%c6, %c0_41, %c0_42] : memref<7x64x64xbf16, #tpu.memory_space<vmem>>, vector<1x64x64xbf16>
    %77 = vector.shape_cast %76 : vector<1x64x64xbf16> to vector<64x64xbf16>
    %78 = arith.truncf %75 : vector<64x256xf32> to vector<64x256xbf16>
    %cst_43 = arith.constant dense<0.000000e+00> : vector<64x256xf32>
    %79 = tpu.matmul %77, %78, %cst_43 {dimension_numbers = #tpu.dot_dimension_numbers<[1], [0], [0], [1], [0, 0, 1, 1], [], []>} : vector<64x64xbf16>, vector<64x256xbf16>, vector<64x256xf32> -> vector<64x256xf32>
    %c6_44 = arith.constant 6 : index
    %c0_45 = arith.constant 0 : index
    %c0_46 = arith.constant 0 : index
    %80 = vector.load %arg5[%c6_44, %c0_45, %c0_46] : memref<7x64x1xf32, #tpu.memory_space<vmem>>, vector<1x64x1xf32>
    %81 = vector.shape_cast %80 : vector<1x64x1xf32> to vector<64x1xf32>
    %82 = vector.broadcast %81 : vector<64x1xf32> to vector<64x256xf32>
    %83 = arith.addf %79, %82 : vector<64x256xf32>
    %84 = math.tanh %83 : vector<64x256xf32>
    %c0_47 = arith.constant 0 : index
    %c0_48 = arith.constant 0 : index
    %85 = vector.load %arg6[%c0_47, %c0_48] : memref<64x1xf32, #tpu.memory_space<vmem>>, vector<64x1xf32>
    %86 = vector.broadcast %85 : vector<64x1xf32> to vector<64x256xf32>
    %87 = arith.mulf %86, %84 : vector<64x256xf32>
    %cst_49 = arith.constant dense<0.000000e+00> : vector<256xf32>
    %88 = vector.multi_reduction <add>, %87, %cst_49 [0] : vector<64x256xf32> to vector<256xf32>
    %89 = vector.shape_cast %88 : vector<256xf32> to vector<1x256xf32>
    %c0_50 = arith.constant 0 : index
    %c0_51 = arith.constant 0 : index
    %90 = vector.load %arg7[%c0_50, %c0_51] : memref<1x1xf32, #tpu.memory_space<vmem>>, vector<1x1xf32>
    %91 = vector.broadcast %90 : vector<1x1xf32> to vector<1x256xf32>
    %92 = arith.addf %89, %91 : vector<1x256xf32>
    %c0_52 = arith.constant 0 : index
    %c0_53 = arith.constant 0 : index
    %93 = vector.load %arg8[%c0_52, %c0_53] : memref<1x256xf32, #tpu.memory_space<vmem>>, vector<1x256xf32>
    tpu.vector_store %arg8[%c0_52, %c0_53], %92 {strides = array<i32>} : memref<1x256xf32, #tpu.memory_space<vmem>>, vector<1x256xf32>,
    return
  }
  func.func @transform_0(%arg0: i32) -> (i32, i32) {
    %c0_i32 = arith.constant 0 : i32
    %c0_i32_0 = arith.constant 0 : i32
    return %c0_i32, %arg0 : i32, i32
  }
  func.func @transform_1(%arg0: i32) -> (i32, i32) {
    %c0_i32 = arith.constant 0 : i32
    %c0_i32_0 = arith.constant 0 : i32
    %c0_i32_1 = arith.constant 0 : i32
    return %c0_i32, %c0_i32_0 : i32, i32
  }
  func.func @transform_2(%arg0: i32) -> (i32, i32) {
    %c0_i32 = arith.constant 0 : i32
    %c0_i32_0 = arith.constant 0 : i32
    %c0_i32_1 = arith.constant 0 : i32
    return %c0_i32, %c0_i32_0 : i32, i32
  }
  func.func @transform_3(%arg0: i32) -> (i32, i32, i32) {
    %c0_i32 = arith.constant 0 : i32
    %c0_i32_0 = arith.constant 0 : i32
    %c0_i32_1 = arith.constant 0 : i32
    %c0_i32_2 = arith.constant 0 : i32
    return %c0_i32, %c0_i32_0, %c0_i32_1 : i32, i32, i32
  }
  func.func @transform_4(%arg0: i32) -> (i32, i32, i32) {
    %c0_i32 = arith.constant 0 : i32
    %c0_i32_0 = arith.constant 0 : i32
    %c0_i32_1 = arith.constant 0 : i32
    %c0_i32_2 = arith.constant 0 : i32
    return %c0_i32, %c0_i32_0, %c0_i32_1 : i32, i32, i32
  }
  func.func @transform_5(%arg0: i32) -> (i32, i32) {
    %c0_i32 = arith.constant 0 : i32
    %c0_i32_0 = arith.constant 0 : i32
    %c0_i32_1 = arith.constant 0 : i32
    return %c0_i32, %c0_i32_0 : i32, i32
  }
  func.func @transform_6(%arg0: i32) -> (i32, i32) {
    %c0_i32 = arith.constant 0 : i32
    %c0_i32_0 = arith.constant 0 : i32
    %c0_i32_1 = arith.constant 0 : i32
    return %c0_i32, %c0_i32_0 : i32, i32
  }
  func.func @transform_7(%arg0: i32) -> (i32, i32) {
    %c0_i32 = arith.constant 0 : i32
    %c0_i32_0 = arith.constant 0 : i32
    return %c0_i32, %arg0 : i32, i32
  }
}

</mosaic_0001>

<llo_original>
// kernel: _wave_apply.1
$region0: #{_wave_apply.1}
  #allocation0 [shape = 'u32[]', space=smem, size = 0x4, offset = 0x4, fixed_abs, tag = 'smem constant byte address 0x4 - core index']
  #allocation1 [shape = 'u32[72,128]{1,0:T(1,128)}', space=vmem, size = 0x9000, scoped, tag = 'internal scratch']
  #allocation2 [shape = 'f32[1,1]{1,0:T(1,128)S(1)}', space=vmem, size = 0x200, scoped, tag = 'scoped memory for _wave_apply.1']
  %s0 = inlined_call_operand.vmem [shape: f32[3,512], index: 0, kind: input, shape index: {}]
  %s1 = inlined_call_operand.vmem [shape: f32[64,3], index: 1, kind: input, shape index: {}]
  %s2 = inlined_call_operand.vmem [shape: f32[64,1], index: 2, kind: input, shape index: {}]
  %s3 = inlined_call_operand.vmem [shape: bf16[7,64,64], index: 3, kind: input, shape index: {}]
  %s4 = inlined_call_operand.vmem [shape: f32[7,64,1], index: 4, kind: input, shape index: {}]
  %s5 = inlined_call_operand.vmem [shape: f32[64,1], index: 5, kind: input, shape index: {}]
  %s6 = inlined_call_operand.<no memory space> [shape: f32[1,1], index: 6, kind: input, shape index: {}]
  %s7 = inlined_call_operand.hbm [shape: f32[1,512], index: 7, kind: output, shape index: {}]
  %s8 = sld [smem:[#allocation0]]
  $region61: #{_wave_apply.1} parent=0
    _
  %s10 = ssub.s32 1, %s8
  %s11 = scalar_select 0, %s10, %s8
  %v12 = vstv %s6
  %13 = vst [vmem:[#allocation2] sm:$0x1] %v12
  $region1: #{_wave_apply.1} parent=0
    #allocation3 [shape = 'u8[2048]{0}', space=vmem, size = 0x800, scoped, tag = 'output window, operand 0']
    #allocation4 [shape = 's32[2]{0}', space=sflag, size = 0x8, scoped, tag = 'scoped memory for _wave_apply.1']
    %14 = vsyncpa [#allocation4], 0
    %s15 = scalar_lea.sflag [#allocation4], 1
    %16 = vsyncpa %s15, 0
    loop: start=0, step=1, limit=4
    $region2: #{_wave_apply.1} parent=1 // loop_pre_header
      _
    $region3: #{_wave_apply.1} parent=1 // loop_header
      %s18 = sphi 0, %s22
      %p19 = scmp.ge.s32.totalorder %s18, 4
      %s28 = sphi 0, %s30
      %s31 = sphi 0, %s28
      %s32 = sphi 0, %s31
      %s48 = sphi 0, %s32
      %s52 = sphi 0, %s52
      %s54 = sphi 0, %s52
      %s55 = sphi 0, %s54
      %s69 = sphi 0, %s55
      %s73 = sphi 0, %s73
      %s75 = sphi 0, %s73
      %s76 = sphi 0, %s75
      %s90 = sphi 0, %s76
      %s94 = sphi 0, %s94
      %s96 = sphi 0, %s94
      %s97 = sphi 0, %s96
      %s111 = sphi 0, %s97
      %s115 = sphi 0, %s115
      %s117 = sphi 0, %s115
      %s118 = sphi 0, %s117
      %s132 = sphi 0, %s118
      %s136 = sphi 0, %s136
      %s138 = sphi 0, %s136
      %s139 = sphi 0, %s138
      %s153 = sphi 0, %s139
      %s157 = sphi 0, %s157
      %s159 = sphi 0, %s157
      %s160 = sphi 0, %s159
      %s174 = sphi 0, %s160
      %s180 = sphi 0, %s182
      %s183 = sphi 0, %s180
      %s184 = sphi 0, %s183
      %s200 = sphi 0, %s184
    $region4: #{_wave_apply.1} parent=1 // loop_header_branch
      %21 = sbr.rel (%p19) target = $region8
    $region5: #{_wave_apply.1} parent=1 // loop_body
      %s23 = ssub.s32 %s18, 1
      %s24 = ssub.s32 %s18, 2
      %s25 = sadd.s32 %s18, 1
      %s26 = ssub.s32 %s18, %s25
      %p27 = scmp.eq.s32.totalorder %s26, 0
      %s29 = sadd.s32 %s28, 1
      %s30 = scalar_select %p27, %s28, %s29
      %p33 = pneg %p27
      %p34 = scmp.eq.s32.totalorder %s18, 1
      %p35 = por %p33, %p34
      %p36 = scmp.ne.s32.totalorder %s28, %s31
      %p37 = scmp.eq.s32.totalorder %s18, 0
      %p38 = por %p36, %p37
      %p39 = scmp.ne.s32.totalorder %s28, %s31
      %p40 = scmp.eq.s32.totalorder %s23, 1
      %p41 = por %p39, %p40
      %p42 = scmp.ne.s32.totalorder %s31, %s32
      %p43 = scmp.eq.s32.totalorder %s23, 0
      %p44 = por %p42, %p43
      %p45 = scmp.ne.s32.totalorder %s31, %s32
      %p46 = scmp.eq.s32.totalorder %s24, 1
      %p47 = por %p45, %p46
      %p49 = scmp.ne.s32.totalorder %s32, %s48
      %p50 = scmp.eq.s32.totalorder %s24, 0
      %p51 = por %p49, %p50
      %s53 = sadd.s32 %s52, 1
      %p56 = scmp.eq.s32.totalorder %s18, 1
      %p57 = scmp.ne.s32.totalorder %s52, %s54
      %p58 = scmp.eq.s32.totalorder %s18, 0
      %p59 = por %p57, %p58
      %p60 = scmp.ne.s32.totalorder %s52, %s54
      %p61 = scmp.eq.s32.totalorder %s23, 1
      %p62 = por %p60, %p61
      %p63 = scmp.ne.s32.totalorder %s54, %s55
      %p64 = scmp.eq.s32.totalorder %s23, 0
      %p65 = por %p63, %p64
      %p66 = scmp.ne.s32.totalorder %s54, %s55
      %p67 = scmp.eq.s32.totalorder %s24, 1
      %p68 = por %p66, %p67
      %p70 = scmp.ne.s32.totalorder %s55, %s69
      %p71 = scmp.eq.s32.totalorder %s24, 0
      %p72 = por %p70, %p71
      %s74 = sadd.s32 %s73, 1
      %p77 = scmp.eq.s32.totalorder %s18, 1
      %p78 = scmp.ne.s32.totalorder %s73, %s75
      %p79 = scmp.eq.s32.totalorder %s18, 0
      %p80 = por %p78, %p79
      %p81 = scmp.ne.s32.totalorder %s73, %s75
      %p82 = scmp.eq.s32.totalorder %s23, 1
      %p83 = por %p81, %p82
      %p84 = scmp.ne.s32.totalorder %s75, %s76
      %p85 = scmp.eq.s32.totalorder %s23, 0
      %p86 = por %p84, %p85
      %p87 = scmp.ne.s32.totalorder %s75, %s76
      %p88 = scmp.eq.s32.totalorder %s24, 1
      %p89 = por %p87, %p88
      %p91 = scmp.ne.s32.totalorder %s76, %s90
      %p92 = scmp.eq.s32.totalorder %s24, 0
      %p93 = por %p91, %p92
      %s95 = sadd.s32 %s94, 1
      %p98 = scmp.eq.s32.totalorder %s18, 1
      %p99 = scmp.ne.s32.totalorder %s94, %s96
      %p100 = scmp.eq.s32.totalorder %s18, 0
      %p101 = por %p99, %p100
      %p102 = scmp.ne.s32.totalorder %s94, %s96
      %p103 = scmp.eq.s32.totalorder %s23, 1
      %p104 = por %p102, %p103
      %p105 = scmp.ne.s32.totalorder %s96, %s97
      %p106 = scmp.eq.s32.totalorder %s23, 0
      %p107 = por %p105, %p106
      %p108 = scmp.ne.s32.totalorder %s96, %s97
      %p109 = scmp.eq.s32.totalorder %s24, 1
      %p110 = por %p108, %p109
      %p112 = scmp.ne.s32.totalorder %s97, %s111
      %p113 = scmp.eq.s32.totalorder %s24, 0
      %p114 = por %p112, %p113
      %s116 = sadd.s32 %s115, 1
      %p119 = scmp.eq.s32.totalorder %s18, 1
      %p120 = scmp.ne.s32.totalorder %s115, %s117
      %p121 = scmp.eq.s32.totalorder %s18, 0
      %p122 = por %p120, %p121
      %p123 = scmp.ne.s32.totalorder %s115, %s117
      %p124 = scmp.eq.s32.totalorder %s23, 1
      %p125 = por %p123, %p124
      %p126 = scmp.ne.s32.totalorder %s117, %s118
      %p127 = scmp.eq.s32.totalorder %s23, 0
      %p128 = por %p126, %p127
      %p129 = scmp.ne.s32.totalorder %s117, %s118
      %p130 = scmp.eq.s32.totalorder %s24, 1
      %p131 = por %p129, %p130
      %p133 = scmp.ne.s32.totalorder %s118, %s132
      %p134 = scmp.eq.s32.totalorder %s24, 0
      %p135 = por %p133, %p134
      %s137 = sadd.s32 %s136, 1
      %p140 = scmp.eq.s32.totalorder %s18, 1
      %p141 = scmp.ne.s32.totalorder %s136, %s138
      %p142 = scmp.eq.s32.totalorder %s18, 0
      %p143 = por %p141, %p142
      %p144 = scmp.ne.s32.totalorder %s136, %s138
      %p145 = scmp.eq.s32.totalorder %s23, 1
      %p146 = por %p144, %p145
      %p147 = scmp.ne.s32.totalorder %s138, %s139
      %p148 = scmp.eq.s32.totalorder %s23, 0
      %p149 = por %p147, %p148
      %p150 = scmp.ne.s32.totalorder %s138, %s139
      %p151 = scmp.eq.s32.totalorder %s24, 1
      %p152 = por %p150, %p151
      %p154 = scmp.ne.s32.totalorder %s139, %s153
      %p155 = scmp.eq.s32.totalorder %s24, 0
      %p156 = por %p154, %p155
      %s158 = sadd.s32 %s157, 1
      %p161 = scmp.eq.s32.totalorder %s18, 1
      %p162 = scmp.ne.s32.totalorder %s157, %s159
      %p163 = scmp.eq.s32.totalorder %s18, 0
      %p164 = por %p162, %p163
      %p165 = scmp.ne.s32.totalorder %s157, %s159
      %p166 = scmp.eq.s32.totalorder %s23, 1
      %p167 = por %p165, %p166
      %p168 = scmp.ne.s32.totalorder %s159, %s160
      %p169 = scmp.eq.s32.totalorder %s23, 0
      %p170 = por %p168, %p169
      %p171 = scmp.ne.s32.totalorder %s159, %s160
      %p172 = scmp.eq.s32.totalorder %s24, 1
      %p173 = por %p171, %p172
      %p175 = scmp.ne.s32.totalorder %s160, %s174
      %p176 = scmp.eq.s32.totalorder %s24, 0
      %p177 = por %p175, %p176
      %s178 = ssub.s32 %s18, %s25
      %p179 = scmp.eq.s32.totalorder %s178, 0
      %s181 = sadd.s32 %s180, 1
      %s182 = scalar_select %p179, %s180, %s181
      %p185 = pneg %p179
      %p186 = scmp.eq.s32.totalorder %s18, 1
      %p187 = por %p185, %p186
      %p188 = scmp.ne.s32.totalorder %s180, %s183
      %p189 = scmp.eq.s32.totalorder %s18, 0
      %p190 = por %p188, %p189
      %p191 = scmp.ne.s32.totalorder %s180, %s183
      %p192 = scmp.eq.s32.totalorder %s23, 1
      %p193 = por %p191, %p192
      %p194 = scmp.ne.s32.totalorder %s183, %s184
      %p195 = scmp.eq.s32.totalorder %s23, 0
      %p196 = por %p194, %p195
      %p197 = scmp.ne.s32.totalorder %s183, %s184
      %p198 = scmp.eq.s32.totalorder %s24, 1
      %p199 = por %p197, %p198
      %p201 = scmp.ne.s32.totalorder %s184, %s200
      %p202 = scmp.eq.s32.totalorder %s24, 0
      %p203 = por %p201, %p202
      %p204 = scmp.le.s32.totalorder 1, %s18
      %p205 = scmp.lt.s32.totalorder %s18, 3
      %p206 = pnand %p204, %p205
      %p207 = pneg %p206
      // Predicated region
      $region9: #{_wave_apply.1} parent=5 // pred_check
        _
      $region10: #{_wave_apply.1} parent=5 // pred_check_branch
        %209 = sbr.rel (%p206) target = $region12
      $region11: #{_wave_apply.1} parent=5 // pred_region
        %s210 = ssub.s32 %s18, 1
        // Predicated region
        $region13: #{_wave_apply.1} parent=11 // pred_check
          %p211 = pneg %p65
        $region14: #{_wave_apply.1} parent=11 // pred_check_branch
          %213 = sbr.rel (%p211) target = $region16
        $region15: #{_wave_apply.1} parent=11 // pred_region
          _
        $region16: #{_wave_apply.1} parent=11 // pred_fallthru
          _
        // Predicated region
        $region17: #{_wave_apply.1} parent=11 // pred_check
          %p214 = pneg %p86
        $region18: #{_wave_apply.1} parent=11 // pred_check_branch
          %216 = sbr.rel (%p214) target = $region20
        $region19: #{_wave_apply.1} parent=11 // pred_region
          _
        $region20: #{_wave_apply.1} parent=11 // pred_fallthru
          _
        // Predicated region
        $region21: #{_wave_apply.1} parent=11 // pred_check
          %p217 = pneg %p107
        $region22: #{_wave_apply.1} parent=11 // pred_check_branch
          %219 = sbr.rel (%p217) target = $region24
        $region23: #{_wave_apply.1} parent=11 // pred_region
          _
        $region24: #{_wave_apply.1} parent=11 // pred_fallthru
          _
        // Predicated region
        $region25: #{_wave_apply.1} parent=11 // pred_check
          %p220 = pneg %p128
        $region26: #{_wave_apply.1} parent=11 // pred_check_branch
          %222 = sbr.rel (%p220) target = $region28
        $region27: #{_wave_apply.1} parent=11 // pred_region
          _
        $region28: #{_wave_apply.1} parent=11 // pred_fallthru
          _
        // Predicated region
        $region29: #{_wave_apply.1} parent=11 // pred_check
          %p223 = pneg %p149
        $region30: #{_wave_apply.1} parent=11 // pred_check_branch
          %225 = sbr.rel (%p223) target = $region32
        $region31: #{_wave_apply.1} parent=11 // pred_region
          _
        $region32: #{_wave_apply.1} parent=11 // pred_fallthru
          _
        // Predicated region
        $region33: #{_wave_apply.1} parent=11 // pred_check
          %p226 = pneg %p170
        $region34: #{_wave_apply.1} parent=11 // pred_check_branch
          %228 = sbr.rel (%p226) target = $region36
        $region35: #{_wave_apply.1} parent=11 // pred_region
          _
        $region36: #{_wave_apply.1} parent=11 // pred_fallthru
          _
      $region12: #{_wave_apply.1} parent=5 // pred_fallthru
        _
      %p229 = scmp.lt.s32.totalorder %s18, 2
      // Predicated region
      $region37: #{_wave_apply.1} parent=5 // pred_check
        %p230 = pneg %p229
      $region38: #{_wave_apply.1} parent=5 // pred_check_branch
        %232 = sbr.rel (%p230) target = $region40
      $region39: #{_wave_apply.1} parent=5 // pred_region
        // Predicated region
        $region41: #{_wave_apply.1} parent=39 // pred_check
          %p233 = pneg %p38
        $region42: #{_wave_apply.1} parent=39 // pred_check_branch
          %235 = sbr.rel (%p233) target = $region44
        $region43: #{_wave_apply.1} parent=39 // pred_region
          %s236 = smul.u32 2, %s18
          %p237 = scmp.lt.s32.totalorder %s236, 3
          %s238 = scalar_select %p237, %s236, 3
          %s239 = smul.addr %s238, 4
          %s240 = scalar_lea.vmem %s0, %s239
          %s241 = smul.u32 2, %s18
        $region44: #{_wave_apply.1} parent=39 // pred_fallthru
          _
      $region40: #{_wave_apply.1} parent=5 // pred_fallthru
        _
      %p242 = scmp.le.s32.totalorder 1, %s18
      %p243 = scmp.lt.s32.totalorder %s18, 3
      %p244 = pnand %p242, %p243
      %p245 = pneg %p244
      // Predicated region
      $region45: #{_wave_apply.1} parent=5 // pred_check
        _
      $region46: #{_wave_apply.1} parent=5 // pred_check_branch
        %247 = sbr.rel (%p244) target = $region48
      $region47: #{_wave_apply.1} parent=5 // pred_region
        %s248 = ssub.s32 %s18, 1
        %s249 = smul.u32 2, %s23
        %p250 = scmp.lt.s32.totalorder %s249, 3
        %s251 = scalar_select %p250, %s249, 3
        %s252 = smul.addr %s251, 4
        %s253 = scalar_lea.vmem %s0, %s252
        %p254 = pneg %p44
        %p255 = pneg %p41
        %p256 = pneg %p65
        %p257 = pneg %p62
        %p258 = pneg %p86
        %p259 = pneg %p83
        %p260 = pneg %p107
        %p261 = pneg %p104
        %p262 = pneg %p128
        %p263 = pneg %p125
        %p264 = pneg %p149
        %p265 = pneg %p146
        %p266 = pneg %p170
        %p267 = pneg %p167
        %p268 = pneg %p196
        %p269 = pneg %p193
        %s270 = sand.u32 %s183, 1
        %s271 = scalar_lea.sflag [#allocation4], %s270
        %s272 = sand.u32 %s183, 1
        %s273 = smul.addr %s272, 2
        %s274 = scalar_lea.vmem [#allocation3], %s273
        %s275 = smul.u32 2, %s23
        %p276 = scmp.lt.s32.totalorder %s275, 3
        %s277 = scalar_select %p276, %s275, 3
        %s278 = smul.addr %s277, 4
        %s279 = scalar_lea.vmem %s0, %s278
        %s280 = smul.u32 2, %s23
        %s281 = smul.u32 2, %s23
        %v283 = vld [vmem:[%s279] sm:$0x77]
        %v284 = vld [vmem:[%s1] sm:$0xff]
        %v285 = vld [vmem:[%s1 + $0x8] sm:$0xff]
        %v286 = vld [vmem:[%s1 + $0x10] sm:$0xff]
        %v287 = vld [vmem:[%s1 + $0x18] sm:$0xff]
        %v288 = vld [vmem:[%s1 + $0x20] sm:$0xff]
        %v289 = vld [vmem:[%s1 + $0x28] sm:$0xff]
        %v290 = vld [vmem:[%s1 + $0x30] sm:$0xff]
        %v291 = vld [vmem:[%s1 + $0x38] sm:$0xff]
        %293 = vset.pattern.permute.xlu0 0
        %294 = vperm.xlu0 %293, %v284
        %v295 = vpop.permute.xlu0 %294
        %298 = vset.pattern.permute.xlu0 0
        %299 = vperm.xlu0 %298, %v285
        %v300 = vpop.permute.xlu0 %299
        %303 = vset.pattern.permute.xlu0 0
        %304 = vperm.xlu0 %303, %v286
        %v305 = vpop.permute.xlu0 %304
        %308 = vset.pattern.permute.xlu0 0
        %309 = vperm.xlu0 %308, %v287
        %v310 = vpop.permute.xlu0 %309
        %313 = vset.pattern.permute.xlu0 0
        %314 = vperm.xlu0 %313, %v288
        %v315 = vpop.permute.xlu0 %314
        %318 = vset.pattern.permute.xlu0 0
        %319 = vperm.xlu0 %318, %v289
        %v320 = vpop.permute.xlu0 %319
        %323 = vset.pattern.permute.xlu0 0
        %324 = vperm.xlu0 %323, %v290
        %v325 = vpop.permute.xlu0 %324
        %328 = vset.pattern.permute.xlu0 0
        %329 = vperm.xlu0 %328, %v291
        %v330 = vpop.permute.xlu0 %329
        %v333 = vperm.slane %v283, 0
        %v334 = vperm.slane %v283, 4
        %v337 = vperm.slane %v333, 0
        %v338 = vperm.slane %v334, 0
        %v339 = vmul.f32 %v295, %v337
        %v340 = vmul.f32 %v295, %v338
        %v341 = vmul.f32 %v300, %v337
        %v342 = vmul.f32 %v300, %v338
        %v343 = vmul.f32 %v305, %v337
        %v344 = vmul.f32 %v305, %v338
        %v345 = vmul.f32 %v310, %v337
        %v346 = vmul.f32 %v310, %v338
        %v347 = vmul.f32 %v315, %v337
        %v348 = vmul.f32 %v315, %v338
        %v349 = vmul.f32 %v320, %v337
        %v350 = vmul.f32 %v320, %v338
        %v351 = vmul.f32 %v325, %v337
        %v352 = vmul.f32 %v325, %v338
        %v353 = vmul.f32 %v330, %v337
        %v354 = vmul.f32 %v330, %v338
        %355 = vset.pattern.permute.xlu0 1
        %356 = vperm.xlu0 %355, %v284
        %v357 = vpop.permute.xlu0 %356
        %359 = vset.pattern.permute.xlu0 1
        %360 = vperm.xlu0 %359, %v285
        %v361 = vpop.permute.xlu0 %360
        %363 = vset.pattern.permute.xlu0 1
        %364 = vperm.xlu0 %363, %v286
        %v365 = vpop.permute.xlu0 %364
        %367 = vset.pattern.permute.xlu0 1
        %368 = vperm.xlu0 %367, %v287
        %v369 = vpop.permute.xlu0 %368
        %371 = vset.pattern.permute.xlu0 1
        %372 = vperm.xlu0 %371, %v288
        %v373 = vpop.permute.xlu0 %372
        %375 = vset.pattern.permute.xlu0 1
        %376 = vperm.xlu0 %375, %v289
        %v377 = vpop.permute.xlu0 %376
        %379 = vset.pattern.permute.xlu0 1
        %380 = vperm.xlu0 %379, %v290
        %v381 = vpop.permute.xlu0 %380
        %383 = vset.pattern.permute.xlu0 1
        %384 = vperm.xlu0 %383, %v291
        %v385 = vpop.permute.xlu0 %384
        %v387 = vperm.slane %v283, 1
        %v388 = vperm.slane %v283, 5
        %v391 = vperm.slane %v387, 1
        %v392 = vperm.slane %v388, 1
        %v393 = vmul.f32 %v357, %v391
        %v394 = vmul.f32 %v357, %v392
        %v395 = vmul.f32 %v361, %v391
        %v396 = vmul.f32 %v361, %v392
        %v397 = vmul.f32 %v365, %v391
        %v398 = vmul.f32 %v365, %v392
        %v399 = vmul.f32 %v369, %v391
        %v400 = vmul.f32 %v369, %v392
        %v401 = vmul.f32 %v373, %v391
        %v402 = vmul.f32 %v373, %v392
        %v403 = vmul.f32 %v377, %v391
        %v404 = vmul.f32 %v377, %v392
        %v405 = vmul.f32 %v381, %v391
        %v406 = vmul.f32 %v381, %v392
        %v407 = vmul.f32 %v385, %v391
        %v408 = vmul.f32 %v385, %v392
        %v409 = vadd.f32 %v339, %v393
        %v410 = vadd.f32 %v340, %v394
        %v411 = vadd.f32 %v341, %v395
        %v412 = vadd.f32 %v342, %v396
        %v413 = vadd.f32 %v343, %v397
        %v414 = vadd.f32 %v344, %v398
        %v415 = vadd.f32 %v345, %v399
        %v416 = vadd.f32 %v346, %v400
        %v417 = vadd.f32 %v347, %v401
        %v418 = vadd.f32 %v348, %v402
        %v419 = vadd.f32 %v349, %v403
        %v420 = vadd.f32 %v350, %v404
        %v421 = vadd.f32 %v351, %v405
        %v422 = vadd.f32 %v352, %v406
        %v423 = vadd.f32 %v353, %v407
        %v424 = vadd.f32 %v354, %v408
        %425 = vset.pattern.permute.xlu0 2
        %426 = vperm.xlu0 %425, %v284
        %v427 = vpop.permute.xlu0 %426
        %429 = vset.pattern.permute.xlu0 2
        %430 = vperm.xlu0 %429, %v285
        %v431 = vpop.permute.xlu0 %430
        %433 = vset.pattern.permute.xlu0 2
        %434 = vperm.xlu0 %433, %v286
        %v435 = vpop.permute.xlu0 %434
        %437 = vset.pattern.permute.xlu0 2
        %438 = vperm.xlu0 %437, %v287
        %v439 = vpop.permute.xlu0 %438
        %441 = vset.pattern.permute.xlu0 2
        %442 = vperm.xlu0 %441, %v288
        %v443 = vpop.permute.xlu0 %442
        %445 = vset.pattern.permute.xlu0 2
        %446 = vperm.xlu0 %445, %v289
        %v447 = vpop.permute.xlu0 %446
        %449 = vset.pattern.permute.xlu0 2
        %450 = vperm.xlu0 %449, %v290
        %v451 = vpop.permute.xlu0 %450
        %453 = vset.pattern.permute.xlu0 2
        %454 = vperm.xlu0 %453, %v291
        %v455 = vpop.permute.xlu0 %454
        %v457 = vperm.slane %v283, 2
        %v458 = vperm.slane %v283, 6
        %v461 = vperm.slane %v457, 2
        %v462 = vperm.slane %v458, 2
        %v463 = vmul.f32 %v427, %v461
        %v464 = vmul.f32 %v427, %v462
        %v465 = vmul.f32 %v431, %v461
        %v466 = vmul.f32 %v431, %v462
        %v467 = vmul.f32 %v435, %v461
        %v468 = vmul.f32 %v435, %v462
        %v469 = vmul.f32 %v439, %v461
        %v470 = vmul.f32 %v439, %v462
        %v471 = vmul.f32 %v443, %v461
        %v472 = vmul.f32 %v443, %v462
        %v473 = vmul.f32 %v447, %v461
        %v474 = vmul.f32 %v447, %v462
        %v475 = vmul.f32 %v451, %v461
        %v476 = vmul.f32 %v451, %v462
        %v477 = vmul.f32 %v455, %v461
        %v478 = vmul.f32 %v455, %v462
        %v479 = vadd.f32 %v409, %v463
        %v480 = vadd.f32 %v410, %v464
        %v481 = vadd.f32 %v411, %v465
        %v482 = vadd.f32 %v412, %v466
        %v483 = vadd.f32 %v413, %v467
        %v484 = vadd.f32 %v414, %v468
        %v485 = vadd.f32 %v415, %v469
        %v486 = vadd.f32 %v416, %v470
        %v487 = vadd.f32 %v417, %v471
        %v488 = vadd.f32 %v418, %v472
        %v489 = vadd.f32 %v419, %v473
        %v490 = vadd.f32 %v420, %v474
        %v491 = vadd.f32 %v421, %v475
        %v492 = vadd.f32 %v422, %v476
        %v493 = vadd.f32 %v423, %v477
        %v494 = vadd.f32 %v424, %v478
        %v495 = vld [vmem:[%s2] sm:$0xff]
        %v496 = vld [vmem:[%s2 + $0x8] sm:$0xff]
        %v497 = vld [vmem:[%s2 + $0x10] sm:$0xff]
        %v498 = vld [vmem:[%s2 + $0x18] sm:$0xff]
        %v499 = vld [vmem:[%s2 + $0x20] sm:$0xff]
        %v500 = vld [vmem:[%s2 + $0x28] sm:$0xff]
        %v501 = vld [vmem:[%s2 + $0x30] sm:$0xff]
        %v502 = vld [vmem:[%s2 + $0x38] sm:$0xff]
        %504 = vset.pattern.permute.xlu0 0
        %505 = vperm.xlu0 %504, %v495
        %v506 = vpop.permute.xlu0 %505
        %509 = vset.pattern.permute.xlu0 0
        %510 = vperm.xlu0 %509, %v496
        %v511 = vpop.permute.xlu0 %510
        %514 = vset.pattern.permute.xlu0 0
        %515 = vperm.xlu0 %514, %v497
        %v516 = vpop.permute.xlu0 %515
        %519 = vset.pattern.permute.xlu0 0
        %520 = vperm.xlu0 %519, %v498
        %v521 = vpop.permute.xlu0 %520
        %524 = vset.pattern.permute.xlu0 0
        %525 = vperm.xlu0 %524, %v499
        %v526 = vpop.permute.xlu0 %525
        %529 = vset.pattern.permute.xlu0 0
        %530 = vperm.xlu0 %529, %v500
        %v531 = vpop.permute.xlu0 %530
        %534 = vset.pattern.permute.xlu0 0
        %535 = vperm.xlu0 %534, %v501
        %v536 = vpop.permute.xlu0 %535
        %539 = vset.pattern.permute.xlu0 0
        %540 = vperm.xlu0 %539, %v502
        %v541 = vpop.permute.xlu0 %540
        %v543 = vadd.f32 %v479, %v506
        %v544 = vadd.f32 %v480, %v506
        %v545 = vadd.f32 %v481, %v511
        %v546 = vadd.f32 %v482, %v511
        %v547 = vadd.f32 %v483, %v516
        %v548 = vadd.f32 %v484, %v516
        %v549 = vadd.f32 %v485, %v521
        %v550 = vadd.f32 %v486, %v521
        %v551 = vadd.f32 %v487, %v526
        %v552 = vadd.f32 %v488, %v526
        %v553 = vadd.f32 %v489, %v531
        %v554 = vadd.f32 %v490, %v531
        %v555 = vadd.f32 %v491, %v536
        %v556 = vadd.f32 %v492, %v536
        %v557 = vadd.f32 %v493, %v541
        %v558 = vadd.f32 %v494, %v541
        %v559 = vld [vmem:[%s3] sm:$0xf]
        %v560 = vld [vmem:[%s3 + $0x4] sm:$0xf]
        %v561 = vld [vmem:[%s3 + $0x8] sm:$0xf]
        %v562 = vld [vmem:[%s3 + $0xc] sm:$0xf]
        %v563 = vld [vmem:[%s3 + $0x10] sm:$0xf]
        %v564 = vld [vmem:[%s3 + $0x14] sm:$0xf]
        %v565 = vld [vmem:[%s3 + $0x18] sm:$0xf]
        %v566 = vld [vmem:[%s3 + $0x1c] sm:$0xf]
        %v567 = vpack.c.bf16 %v545, %v543
        %v568 = vpack.c.bf16 %v546, %v544
        %v569 = vpack.c.bf16 %v549, %v547
        %v570 = vpack.c.bf16 %v550, %v548
        %v571 = vpack.c.bf16 %v553, %v551
        %v572 = vpack.c.bf16 %v554, %v552
        %v573 = vpack.c.bf16 %v557, %v555
        %v574 = vpack.c.bf16 %v558, %v556
        %v575 = vld [vmem:[%s4] sm:$0xff]
        %v576 = vld [vmem:[%s4 + $0x8] sm:$0xff]
        %v577 = vld [vmem:[%s4 + $0x10] sm:$0xff]
        %v578 = vld [vmem:[%s4 + $0x18] sm:$0xff]
        %v579 = vld [vmem:[%s4 + $0x20] sm:$0xff]
        %v580 = vld [vmem:[%s4 + $0x28] sm:$0xff]
        %v581 = vld [vmem:[%s4 + $0x30] sm:$0xff]
        %v582 = vld [vmem:[%s4 + $0x38] sm:$0xff]
        %584 = vset.pattern.permute.xlu0 0
        %585 = vperm.xlu0 %584, %v575
        %v586 = vpop.permute.xlu0 %585
        %589 = vset.pattern.permute.xlu0 0
        %590 = vperm.xlu0 %589, %v576
        %v591 = vpop.permute.xlu0 %590
        %594 = vset.pattern.permute.xlu0 0
        %595 = vperm.xlu0 %594, %v577
        %v596 = vpop.permute.xlu0 %595
        %599 = vset.pattern.permute.xlu0 0
        %600 = vperm.xlu0 %599, %v578
        %v601 = vpop.permute.xlu0 %600
        %604 = vset.pattern.permute.xlu0 0
        %605 = vperm.xlu0 %604, %v579
        %v606 = vpop.permute.xlu0 %605
        %609 = vset.pattern.permute.xlu0 0
        %610 = vperm.xlu0 %609, %v580
        %v611 = vpop.permute.xlu0 %610
        %614 = vset.pattern.permute.xlu0 0
        %615 = vperm.xlu0 %614, %v581
        %v616 = vpop.permute.xlu0 %615
        %619 = vset.pattern.permute.xlu0 0
        %620 = vperm.xlu0 %619, %v582
        %v621 = vpop.permute.xlu0 %620
        %v631 = vunpack.c.l.b16 %v559
        %v632 = vunpack.c.l.b16 %v560
        %v633 = vunpack.c.l.b16 %v561
        %v634 = vunpack.c.l.b16 %v562
        %v635 = vunpack.c.l.b16 %v563
        %v636 = vunpack.c.l.b16 %v564
        %v637 = vunpack.c.l.b16 %v565
        %v638 = vunpack.c.l.b16 %v566
        %v639 = vpack.c.b16 %v632, %v631
        %v640 = vpack.c.b16 %v634, %v633
        %v641 = vpack.c.b16 %v636, %v635
        %v642 = vpack.c.b16 %v638, %v637
        %vm643 = vcmask 523264
        %v645 = vsel %vm643, %v639, 0
        %v648 = vsel %vm643, %v640, 0
        %v651 = vsel %vm643, %v641, 0
        %v654 = vsel %vm643, %v642, 0
        %656 = vmatpush.bf16.msra.mxu0 0
        %657 = vmatpush.bf16.msra.mxu0 0
        %658 = vmatpush.bf16.msra.mxu0 0
        %659 = vmatpush.bf16.msra.mxu0 0
        %660 = vmatpush.bf16.msra.mxu0 %v573
        %661 = vmatpush.bf16.msra.mxu0 %v571
        %662 = vmatpush.bf16.msra.mxu0 %v569
        %663 = vmatpush.bf16.msra.mxu0 %v567
        %664 = vmatmul.bf16.gmra.mxu0 %v645
        %v665 = vpop.f32.mrf.mxu0
        %v666 = vadd.f32 %v586, %v665
        %v667 = vpop.f32.mrf.mxu0
        %v668 = vadd.f32 %v591, %v667
        %669 = vmatmul.bf16.gmra.mxu0 %v648
        %v670 = vpop.f32.mrf.mxu0
        %v671 = vadd.f32 %v596, %v670
        %v672 = vpop.f32.mrf.mxu0
        %v673 = vadd.f32 %v601, %v672
        %674 = vmatmul.bf16.gmra.mxu0 %v651
        %v675 = vpop.f32.mrf.mxu0
        %v676 = vadd.f32 %v606, %v675
        %v677 = vpop.f32.mrf.mxu0
        %v678 = vadd.f32 %v611, %v677
        %679 = vmatmul.bf16.gmra.mxu0 %v654
        %v680 = vpop.f32.mrf.mxu0
        %v681 = vadd.f32 %v616, %v680
        %v682 = vpop.f32.mrf.mxu0
        %v683 = vadd.f32 %v621, %v682
        %684 = vdwg.mxu0
        %685 = vmatpush.bf16.msra.mxu0 0
        %686 = vmatpush.bf16.msra.mxu0 0
        %687 = vmatpush.bf16.msra.mxu0 0
        %688 = vmatpush.bf16.msra.mxu0 0
        %689 = vmatpush.bf16.msra.mxu0 %v574
        %690 = vmatpush.bf16.msra.mxu0 %v572
        %691 = vmatpush.bf16.msra.mxu0 %v570
        %692 = vmatpush.bf16.msra.mxu0 %v568
        %693 = vmatmul.bf16.gmra.mxu0 %v645
        %v694 = vpop.f32.mrf.mxu0
        %v695 = vadd.f32 %v586, %v694
        %v696 = vpop.f32.mrf.mxu0
        %v697 = vadd.f32 %v591, %v696
        %698 = vmatmul.bf16.gmra.mxu0 %v648
        %v699 = vpop.f32.mrf.mxu0
        %v700 = vadd.f32 %v596, %v699
        %v701 = vpop.f32.mrf.mxu0
        %v702 = vadd.f32 %v601, %v701
        %703 = vmatmul.bf16.gmra.mxu0 %v651
        %v704 = vpop.f32.mrf.mxu0
        %v705 = vadd.f32 %v606, %v704
        %v706 = vpop.f32.mrf.mxu0
        %v707 = vadd.f32 %v611, %v706
        %708 = vmatmul.bf16.gmra.mxu0 %v654
        %v709 = vpop.f32.mrf.mxu0
        %v710 = vadd.f32 %v616, %v709
        %v711 = vpop.f32.mrf.mxu0
        %v712 = vadd.f32 %v621, %v711
        %713 = vdwg.mxu0
        %v714 = vtanh.pop %v666
        %v715 = vtanh.pop %v695
        %v716 = vtanh.pop %v668
        %v717 = vtanh.pop %v697
        %v718 = vtanh.pop %v671
        %v719 = vtanh.pop %v700
        %v720 = vtanh.pop %v673
        %v721 = vtanh.pop %v702
        %v722 = vtanh.pop %v676
        %v723 = vtanh.pop %v705
        %v724 = vtanh.pop %v678
        %v725 = vtanh.pop %v707
        %v726 = vtanh.pop %v681
        %v727 = vtanh.pop %v710
        %v728 = vtanh.pop %v683
        %v729 = vtanh.pop %v712
        %s730 = scalar_lea.vmem %s3, 32
        %v731 = vld [vmem:[%s730] sm:$0xf]
        %v732 = vld [vmem:[%s730 + $0x4] sm:$0xf]
        %v733 = vld [vmem:[%s730 + $0x8] sm:$0xf]
        %v734 = vld [vmem:[%s730 + $0xc] sm:$0xf]
        %v735 = vld [vmem:[%s730 + $0x10] sm:$0xf]
        %v736 = vld [vmem:[%s730 + $0x14] sm:$0xf]
        %v737 = vld [vmem:[%s730 + $0x18] sm:$0xf]
        %v738 = vld [vmem:[%s730 + $0x1c] sm:$0xf]
        %v739 = vpack.c.bf16 %v716, %v714
        %v740 = vpack.c.bf16 %v717, %v715
        %v741 = vpack.c.bf16 %v720, %v718
        %v742 = vpack.c.bf16 %v721, %v719
        %v743 = vpack.c.bf16 %v724, %v722
        %v744 = vpack.c.bf16 %v725, %v723
        %v745 = vpack.c.bf16 %v728, %v726
        %v746 = vpack.c.bf16 %v729, %v727
        %s747 = scalar_lea.vmem %s4, 64
        %v748 = vld [vmem:[%s747] sm:$0xff]
        %v749 = vld [vmem:[%s747 + $0x8] sm:$0xff]
        %v750 = vld [vmem:[%s747 + $0x10] sm:$0xff]
        %v751 = vld [vmem:[%s747 + $0x18] sm:$0xff]
        %v752 = vld [vmem:[%s747 + $0x20] sm:$0xff]
        %v753 = vld [vmem:[%s747 + $0x28] sm:$0xff]
        %v754 = vld [vmem:[%s747 + $0x30] sm:$0xff]
        %v755 = vld [vmem:[%s747 + $0x38] sm:$0xff]
        %757 = vset.pattern.permute.xlu0 0
        %758 = vperm.xlu0 %757, %v748
        %v759 = vpop.permute.xlu0 %758
        %762 = vset.pattern.permute.xlu0 0
        %763 = vperm.xlu0 %762, %v749
        %v764 = vpop.permute.xlu0 %763
        %767 = vset.pattern.permute.xlu0 0
        %768 = vperm.xlu0 %767, %v750
        %v769 = vpop.permute.xlu0 %768
        %772 = vset.pattern.permute.xlu0 0
        %773 = vperm.xlu0 %772, %v751
        %v774 = vpop.permute.xlu0 %773
        %777 = vset.pattern.permute.xlu0 0
        %778 = vperm.xlu0 %777, %v752
        %v779 = vpop.permute.xlu0 %778
        %782 = vset.pattern.permute.xlu0 0
        %783 = vperm.xlu0 %782, %v753
        %v784 = vpop.permute.xlu0 %783
        %787 = vset.pattern.permute.xlu0 0
        %788 = vperm.xlu0 %787, %v754
        %v789 = vpop.permute.xlu0 %788
        %792 = vset.pattern.permute.xlu0 0
        %793 = vperm.xlu0 %792, %v755
        %v794 = vpop.permute.xlu0 %793
        %v804 = vunpack.c.l.b16 %v731
        %v805 = vunpack.c.l.b16 %v732
        %v806 = vunpack.c.l.b16 %v733
        %v807 = vunpack.c.l.b16 %v734
        %v808 = vunpack.c.l.b16 %v735
        %v809 = vunpack.c.l.b16 %v736
        %v810 = vunpack.c.l.b16 %v737
        %v811 = vunpack.c.l.b16 %v738
        %v812 = vpack.c.b16 %v805, %v804
        %v813 = vpack.c.b16 %v807, %v806
        %v814 = vpack.c.b16 %v809, %v808
        %v815 = vpack.c.b16 %v811, %v810
        %v817 = vsel %vm643, %v812, 0
        %v820 = vsel %vm643, %v813, 0
        %v823 = vsel %vm643, %v814, 0
        %v826 = vsel %vm643, %v815, 0
        %828 = vmatpush.bf16.msra.mxu0 0
        %829 = vmatpush.bf16.msra.mxu0 0
        %830 = vmatpush.bf16.msra.mxu0 0
        %831 = vmatpush.bf16.msra.mxu0 0
        %832 = vmatpush.bf16.msra.mxu0 %v745
        %833 = vmatpush.bf16.msra.mxu0 %v743
        %834 = vmatpush.bf16.msra.mxu0 %v741
        %835 = vmatpush.bf16.msra.mxu0 %v739
        %836 = vmatmul.bf16.gmra.mxu0 %v817
        %v837 = vpop.f32.mrf.mxu0
        %v838 = vadd.f32 %v759, %v837
        %v839 = vpop.f32.mrf.mxu0
        %v840 = vadd.f32 %v764, %v839
        %841 = vmatmul.bf16.gmra.mxu0 %v820
        %v842 = vpop.f32.mrf.mxu0
        %v843 = vadd.f32 %v769, %v842
        %v844 = vpop.f32.mrf.mxu0
        %v845 = vadd.f32 %v774, %v844
        %846 = vmatmul.bf16.gmra.mxu0 %v823
        %v847 = vpop.f32.mrf.mxu0
        %v848 = vadd.f32 %v779, %v847
        %v849 = vpop.f32.mrf.mxu0
        %v850 = vadd.f32 %v784, %v849
        %851 = vmatmul.bf16.gmra.mxu0 %v826
        %v852 = vpop.f32.mrf.mxu0
        %v853 = vadd.f32 %v789, %v852
        %v854 = vpop.f32.mrf.mxu0
        %v855 = vadd.f32 %v794, %v854
        %856 = vdwg.mxu0
        %857 = vmatpush.bf16.msra.mxu0 0
        %858 = vmatpush.bf16.msra.mxu0 0
        %859 = vmatpush.bf16.msra.mxu0 0
        %860 = vmatpush.bf16.msra.mxu0 0
        %861 = vmatpush.bf16.msra.mxu0 %v746
        %862 = vmatpush.bf16.msra.mxu0 %v744
        %863 = vmatpush.bf16.msra.mxu0 %v742
        %864 = vmatpush.bf16.msra.mxu0 %v740
        %865 = vmatmul.bf16.gmra.mxu0 %v817
        %v866 = vpop.f32.mrf.mxu0
        %v867 = vadd.f32 %v759, %v866
        %v868 = vpop.f32.mrf.mxu0
        %v869 = vadd.f32 %v764, %v868
        %870 = vmatmul.bf16.gmra.mxu0 %v820
        %v871 = vpop.f32.mrf.mxu0
        %v872 = vadd.f32 %v769, %v871
        %v873 = vpop.f32.mrf.mxu0
        %v874 = vadd.f32 %v774, %v873
        %875 = vmatmul.bf16.gmra.mxu0 %v823
        %v876 = vpop.f32.mrf.mxu0
        %v877 = vadd.f32 %v779, %v876
        %v878 = vpop.f32.mrf.mxu0
        %v879 = vadd.f32 %v784, %v878
        %880 = vmatmul.bf16.gmra.mxu0 %v826
        %v881 = vpop.f32.mrf.mxu0
        %v882 = vadd.f32 %v789, %v881
        %v883 = vpop.f32.mrf.mxu0
        %v884 = vadd.f32 %v794, %v883
        %885 = vdwg.mxu0
        %v886 = vtanh.pop %v838
        %v887 = vtanh.pop %v867
        %v888 = vtanh.pop %v840
        %v889 = vtanh.pop %v869
        %v890 = vtanh.pop %v843
        %v891 = vtanh.pop %v872
        %v892 = vtanh.pop %v845
        %v893 = vtanh.pop %v874
        %v894 = vtanh.pop %v848
        %v895 = vtanh.pop %v877
        %v896 = vtanh.pop %v850
        %v897 = vtanh.pop %v879
        %v898 = vtanh.pop %v853
        %v899 = vtanh.pop %v882
        %v900 = vtanh.pop %v855
        %v901 = vtanh.pop %v884
        %s902 = scalar_lea.vmem %s3, 64
        %v903 = vld [vmem:[%s902] sm:$0xf]
        %v904 = vld [vmem:[%s902 + $0x4] sm:$0xf]
        %v905 = vld [vmem:[%s902 + $0x8] sm:$0xf]
        %v906 = vld [vmem:[%s902 + $0xc] sm:$0xf]
        %v907 = vld [vmem:[%s902 + $0x10] sm:$0xf]
        %v908 = vld [vmem:[%s902 + $0x14] sm:$0xf]
        %v909 = vld [vmem:[%s902 + $0x18] sm:$0xf]
        %v910 = vld [vmem:[%s902 + $0x1c] sm:$0xf]
        %v911 = vpack.c.bf16 %v888, %v886
        %v912 = vpack.c.bf16 %v889, %v887
        %v913 = vpack.c.bf16 %v892, %v890
        %v914 = vpack.c.bf16 %v893, %v891
        %v915 = vpack.c.bf16 %v896, %v894
        %v916 = vpack.c.bf16 %v897, %v895
        %v917 = vpack.c.bf16 %v900, %v898
        %v918 = vpack.c.bf16 %v901, %v899
        %s919 = scalar_lea.vmem %s4, 128
        %v920 = vld [vmem:[%s919] sm:$0xff]
        %v921 = vld [vmem:[%s919 + $0x8] sm:$0xff]
        %v922 = vld [vmem:[%s919 + $0x10] sm:$0xff]
        %v923 = vld [vmem:[%s919 + $0x18] sm:$0xff]
        %v924 = vld [vmem:[%s919 + $0x20] sm:$0xff]
        %v925 = vld [vmem:[%s919 + $0x28] sm:$0xff]
        %v926 = vld [vmem:[%s919 + $0x30] sm:$0xff]
        %v927 = vld [vmem:[%s919 + $0x38] sm:$0xff]
        %929 = vset.pattern.permute.xlu0 0
        %930 = vperm.xlu0 %929, %v920
        %v931 = vpop.permute.xlu0 %930
        %934 = vset.pattern.permute.xlu0 0
        %935 = vperm.xlu0 %934, %v921
        %v936 = vpop.permute.xlu0 %935
        %939 = vset.pattern.permute.xlu0 0
        %940 = vperm.xlu0 %939, %v922
        %v941 = vpop.permute.xlu0 %940
        %944 = vset.pattern.permute.xlu0 0
        %945 = vperm.xlu0 %944, %v923
        %v946 = vpop.permute.xlu0 %945
        %949 = vset.pattern.permute.xlu0 0
        %950 = vperm.xlu0 %949, %v924
        %v951 = vpop.permute.xlu0 %950
        %954 = vset.pattern.permute.xlu0 0
        %955 = vperm.xlu0 %954, %v925
        %v956 = vpop.permute.xlu0 %955
        %959 = vset.pattern.permute.xlu0 0
        %960 = vperm.xlu0 %959, %v926
        %v961 = vpop.permute.xlu0 %960
        %964 = vset.pattern.permute.xlu0 0
        %965 = vperm.xlu0 %964, %v927
        %v966 = vpop.permute.xlu0 %965
        %v976 = vunpack.c.l.b16 %v903
        %v977 = vunpack.c.l.b16 %v904
        %v978 = vunpack.c.l.b16 %v905
        %v979 = vunpack.c.l.b16 %v906
        %v980 = vunpack.c.l.b16 %v907
        %v981 = vunpack.c.l.b16 %v908
        %v982 = vunpack.c.l.b16 %v909
        %v983 = vunpack.c.l.b16 %v910
        %v984 = vpack.c.b16 %v977, %v976
        %v985 = vpack.c.b16 %v979, %v978
        %v986 = vpack.c.b16 %v981, %v980
        %v987 = vpack.c.b16 %v983, %v982
        %v989 = vsel %vm643, %v984, 0
        %v992 = vsel %vm643, %v985, 0
        %v995 = vsel %vm643, %v986, 0
        %v998 = vsel %vm643, %v987, 0
        %1000 = vmatpush.bf16.msra.mxu0 0
        %1001 = vmatpush.bf16.msra.mxu0 0
        %1002 = vmatpush.bf16.msra.mxu0 0
        %1003 = vmatpush.bf16.msra.mxu0 0
        %1004 = vmatpush.bf16.msra.mxu0 %v917
        %1005 = vmatpush.bf16.msra.mxu0 %v915
        %1006 = vmatpush.bf16.msra.mxu0 %v913
        %1007 = vmatpush.bf16.msra.mxu0 %v911
        %1008 = vmatmul.bf16.gmra.mxu0 %v989
        %v1009 = vpop.f32.mrf.mxu0
        %v1010 = vadd.f32 %v931, %v1009
        %v1011 = vpop.f32.mrf.mxu0
        %v1012 = vadd.f32 %v936, %v1011
        %1013 = vmatmul.bf16.gmra.mxu0 %v992
        %v1014 = vpop.f32.mrf.mxu0
        %v1015 = vadd.f32 %v941, %v1014
        %v1016 = vpop.f32.mrf.mxu0
        %v1017 = vadd.f32 %v946, %v1016
        %1018 = vmatmul.bf16.gmra.mxu0 %v995
        %v1019 = vpop.f32.mrf.mxu0
        %v1020 = vadd.f32 %v951, %v1019
        %v1021 = vpop.f32.mrf.mxu0
        %v1022 = vadd.f32 %v956, %v1021
        %1023 = vmatmul.bf16.gmra.mxu0 %v998
        %v1024 = vpop.f32.mrf.mxu0
        %v1025 = vadd.f32 %v961, %v1024
        %v1026 = vpop.f32.mrf.mxu0
        %v1027 = vadd.f32 %v966, %v1026
        %1028 = vdwg.mxu0
        %1029 = vmatpush.bf16.msra.mxu0 0
        %1030 = vmatpush.bf16.msra.mxu0 0
        %1031 = vmatpush.bf16.msra.mxu0 0
        %1032 = vmatpush.bf16.msra.mxu0 0
        %1033 = vmatpush.bf16.msra.mxu0 %v918
        %1034 = vmatpush.bf16.msra.mxu0 %v916
        %1035 = vmatpush.bf16.msra.mxu0 %v914
        %1036 = vmatpush.bf16.msra.mxu0 %v912
        %1037 = vmatmul.bf16.gmra.mxu0 %v989
        %v1038 = vpop.f32.mrf.mxu0
        %v1039 = vadd.f32 %v931, %v1038
        %v1040 = vpop.f32.mrf.mxu0
        %v1041 = vadd.f32 %v936, %v1040
        %1042 = vmatmul.bf16.gmra.mxu0 %v992
        %v1043 = vpop.f32.mrf.mxu0
        %v1044 = vadd.f32 %v941, %v1043
        %v1045 = vpop.f32.mrf.mxu0
        %v1046 = vadd.f32 %v946, %v1045
        %1047 = vmatmul.bf16.gmra.mxu0 %v995
        %v1048 = vpop.f32.mrf.mxu0
        %v1049 = vadd.f32 %v951, %v1048
        %v1050 = vpop.f32.mrf.mxu0
        %v1051 = vadd.f32 %v956, %v1050
        %1052 = vmatmul.bf16.gmra.mxu0 %v998
        %v1053 = vpop.f32.mrf.mxu0
        %v1054 = vadd.f32 %v961, %v1053
        %v1055 = vpop.f32.mrf.mxu0
        %v1056 = vadd.f32 %v966, %v1055
        %1057 = vdwg.mxu0
        %v1058 = vtanh.pop %v1010
        %v1059 = vtanh.pop %v1039
        %v1060 = vtanh.pop %v1012
        %v1061 = vtanh.pop %v1041
        %v1062 = vtanh.pop %v1015
        %v1063 = vtanh.pop %v1044
        %v1064 = vtanh.pop %v1017
        %v1065 = vtanh.pop %v1046
        %v1066 = vtanh.pop %v1020
        %v1067 = vtanh.pop %v1049
        %v1068 = vtanh.pop %v1022
        %v1069 = vtanh.pop %v1051
        %v1070 = vtanh.pop %v1025
        %v1071 = vtanh.pop %v1054
        %v1072 = vtanh.pop %v1027
        %v1073 = vtanh.pop %v1056
        %s1074 = scalar_lea.vmem %s3, 96
        %v1075 = vld [vmem:[%s1074] sm:$0xf]
        %v1076 = vld [vmem:[%s1074 + $0x4] sm:$0xf]
        %v1077 = vld [vmem:[%s1074 + $0x8] sm:$0xf]
        %v1078 = vld [vmem:[%s1074 + $0xc] sm:$0xf]
        %v1079 = vld [vmem:[%s1074 + $0x10] sm:$0xf]
        %v1080 = vld [vmem:[%s1074 + $0x14] sm:$0xf]
        %v1081 = vld [vmem:[%s1074 + $0x18] sm:$0xf]
        %v1082 = vld [vmem:[%s1074 + $0x1c] sm:$0xf]
        %v1083 = vpack.c.bf16 %v1060, %v1058
        %v1084 = vpack.c.bf16 %v1061, %v1059
        %v1085 = vpack.c.bf16 %v1064, %v1062
        %v1086 = vpack.c.bf16 %v1065, %v1063
        %v1087 = vpack.c.bf16 %v1068, %v1066
        %v1088 = vpack.c.bf16 %v1069, %v1067
        %v1089 = vpack.c.bf16 %v1072, %v1070
        %v1090 = vpack.c.bf16 %v1073, %v1071
        %s1091 = scalar_lea.vmem %s4, 192
        %v1092 = vld [vmem:[%s1091] sm:$0xff]
        %v1093 = vld [vmem:[%s1091 + $0x8] sm:$0xff]
        %v1094 = vld [vmem:[%s1091 + $0x10] sm:$0xff]
        %v1095 = vld [vmem:[%s1091 + $0x18] sm:$0xff]
        %v1096 = vld [vmem:[%s1091 + $0x20] sm:$0xff]
        %v1097 = vld [vmem:[%s1091 + $0x28] sm:$0xff]
        %v1098 = vld [vmem:[%s1091 + $0x30] sm:$0xff]
        %v1099 = vld [vmem:[%s1091 + $0x38] sm:$0xff]
        %1101 = vset.pattern.permute.xlu0 0
        %1102 = vperm.xlu0 %1101, %v1092
        %v1103 = vpop.permute.xlu0 %1102
        %1106 = vset.pattern.permute.xlu0 0
        %1107 = vperm.xlu0 %1106, %v1093
        %v1108 = vpop.permute.xlu0 %1107
        %1111 = vset.pattern.permute.xlu0 0
        %1112 = vperm.xlu0 %1111, %v1094
        %v1113 = vpop.permute.xlu0 %1112
        %1116 = vset.pattern.permute.xlu0 0
        %1117 = vperm.xlu0 %1116, %v1095
        %v1118 = vpop.permute.xlu0 %1117
        %1121 = vset.pattern.permute.xlu0 0
        %1122 = vperm.xlu0 %1121, %v1096
        %v1123 = vpop.permute.xlu0 %1122
        %1126 = vset.pattern.permute.xlu0 0
        %1127 = vperm.xlu0 %1126, %v1097
        %v1128 = vpop.permute.xlu0 %1127
        %1131 = vset.pattern.permute.xlu0 0
        %1132 = vperm.xlu0 %1131, %v1098
        %v1133 = vpop.permute.xlu0 %1132
        %1136 = vset.pattern.permute.xlu0 0
        %1137 = vperm.xlu0 %1136, %v1099
        %v1138 = vpop.permute.xlu0 %1137
        %v1148 = vunpack.c.l.b16 %v1075
        %v1149 = vunpack.c.l.b16 %v1076
        %v1150 = vunpack.c.l.b16 %v1077
        %v1151 = vunpack.c.l.b16 %v1078
        %v1152 = vunpack.c.l.b16 %v1079
        %v1153 = vunpack.c.l.b16 %v1080
        %v1154 = vunpack.c.l.b16 %v1081
        %v1155 = vunpack.c.l.b16 %v1082
        %v1156 = vpack.c.b16 %v1149, %v1148
        %v1157 = vpack.c.b16 %v1151, %v1150
        %v1158 = vpack.c.b16 %v1153, %v1152
        %v1159 = vpack.c.b16 %v1155, %v1154
        %v1161 = vsel %vm643, %v1156, 0
        %v1164 = vsel %vm643, %v1157, 0
        %v1167 = vsel %vm643, %v1158, 0
        %v1170 = vsel %vm643, %v1159, 0
        %1172 = vmatpush.bf16.msra.mxu0 0
        %1173 = vmatpush.bf16.msra.mxu0 0
        %1174 = vmatpush.bf16.msra.mxu0 0
        %1175 = vmatpush.bf16.msra.mxu0 0
        %1176 = vmatpush.bf16.msra.mxu0 %v1089
        %1177 = vmatpush.bf16.msra.mxu0 %v1087
        %1178 = vmatpush.bf16.msra.mxu0 %v1085
        %1179 = vmatpush.bf16.msra.mxu0 %v1083
        %1180 = vmatmul.bf16.gmra.mxu0 %v1161
        %v1181 = vpop.f32.mrf.mxu0
        %v1182 = vadd.f32 %v1103, %v1181
        %v1183 = vpop.f32.mrf.mxu0
        %v1184 = vadd.f32 %v1108, %v1183
        %1185 = vmatmul.bf16.gmra.mxu0 %v1164
        %v1186 = vpop.f32.mrf.mxu0
        %v1187 = vadd.f32 %v1113, %v1186
        %v1188 = vpop.f32.mrf.mxu0
        %v1189 = vadd.f32 %v1118, %v1188
        %1190 = vmatmul.bf16.gmra.mxu0 %v1167
        %v1191 = vpop.f32.mrf.mxu0
        %v1192 = vadd.f32 %v1123, %v1191
        %v1193 = vpop.f32.mrf.mxu0
        %v1194 = vadd.f32 %v1128, %v1193
        %1195 = vmatmul.bf16.gmra.mxu0 %v1170
        %v1196 = vpop.f32.mrf.mxu0
        %v1197 = vadd.f32 %v1133, %v1196
        %v1198 = vpop.f32.mrf.mxu0
        %v1199 = vadd.f32 %v1138, %v1198
        %1200 = vdwg.mxu0
        %1201 = vmatpush.bf16.msra.mxu0 0
        %1202 = vmatpush.bf16.msra.mxu0 0
        %1203 = vmatpush.bf16.msra.mxu0 0
        %1204 = vmatpush.bf16.msra.mxu0 0
        %1205 = vmatpush.bf16.msra.mxu0 %v1090
        %1206 = vmatpush.bf16.msra.mxu0 %v1088
        %1207 = vmatpush.bf16.msra.mxu0 %v1086
        %1208 = vmatpush.bf16.msra.mxu0 %v1084
        %1209 = vmatmul.bf16.gmra.mxu0 %v1161
        %v1210 = vpop.f32.mrf.mxu0
        %v1211 = vadd.f32 %v1103, %v1210
        %v1212 = vpop.f32.mrf.mxu0
        %v1213 = vadd.f32 %v1108, %v1212
        %1214 = vmatmul.bf16.gmra.mxu0 %v1164
        %v1215 = vpop.f32.mrf.mxu0
        %v1216 = vadd.f32 %v1113, %v1215
        %v1217 = vpop.f32.mrf.mxu0
        %v1218 = vadd.f32 %v1118, %v1217
        %1219 = vmatmul.bf16.gmra.mxu0 %v1167
        %v1220 = vpop.f32.mrf.mxu0
        %v1221 = vadd.f32 %v1123, %v1220
        %v1222 = vpop.f32.mrf.mxu0
        %v1223 = vadd.f32 %v1128, %v1222
        %1224 = vmatmul.bf16.gmra.mxu0 %v1170
        %v1225 = vpop.f32.mrf.mxu0
        %v1226 = vadd.f32 %v1133, %v1225
        %v1227 = vpop.f32.mrf.mxu0
        %v1228 = vadd.f32 %v1138, %v1227
        %1229 = vdwg.mxu0
        %v1230 = vtanh.pop %v1182
        %v1231 = vtanh.pop %v1211
        %v1232 = vtanh.pop %v1184
        %v1233 = vtanh.pop %v1213
        %v1234 = vtanh.pop %v1187
        %v1235 = vtanh.pop %v1216
        %v1236 = vtanh.pop %v1189
        %v1237 = vtanh.pop %v1218
        %v1238 = vtanh.pop %v1192
        %v1239 = vtanh.pop %v1221
        %v1240 = vtanh.pop %v1194
        %v1241 = vtanh.pop %v1223
        %v1242 = vtanh.pop %v1197
        %v1243 = vtanh.pop %v1226
        %v1244 = vtanh.pop %v1199
        %v1245 = vtanh.pop %v1228
        %s1246 = scalar_lea.vmem %s3, 128
        %v1247 = vld [vmem:[%s1246] sm:$0xf]
        %v1248 = vld [vmem:[%s1246 + $0x4] sm:$0xf]
        %v1249 = vld [vmem:[%s1246 + $0x8] sm:$0xf]
        %v1250 = vld [vmem:[%s1246 + $0xc] sm:$0xf]
        %v1251 = vld [vmem:[%s1246 + $0x10] sm:$0xf]
        %v1252 = vld [vmem:[%s1246 + $0x14] sm:$0xf]
        %v1253 = vld [vmem:[%s1246 + $0x18] sm:$0xf]
        %v1254 = vld [vmem:[%s1246 + $0x1c] sm:$0xf]
        %v1255 = vpack.c.bf16 %v1232, %v1230
        %v1256 = vpack.c.bf16 %v1233, %v1231
        %v1257 = vpack.c.bf16 %v1236, %v1234
        %v1258 = vpack.c.bf16 %v1237, %v1235
        %v1259 = vpack.c.bf16 %v1240, %v1238
        %v1260 = vpack.c.bf16 %v1241, %v1239
        %v1261 = vpack.c.bf16 %v1244, %v1242
        %v1262 = vpack.c.bf16 %v1245, %v1243
        %s1263 = scalar_lea.vmem %s4, 256
        %v1264 = vld [vmem:[%s1263] sm:$0xff]
        %v1265 = vld [vmem:[%s1263 + $0x8] sm:$0xff]
        %v1266 = vld [vmem:[%s1263 + $0x10] sm:$0xff]
        %v1267 = vld [vmem:[%s1263 + $0x18] sm:$0xff]
        %v1268 = vld [vmem:[%s1263 + $0x20] sm:$0xff]
        %v1269 = vld [vmem:[%s1263 + $0x28] sm:$0xff]
        %v1270 = vld [vmem:[%s1263 + $0x30] sm:$0xff]
        %v1271 = vld [vmem:[%s1263 + $0x38] sm:$0xff]
        %1273 = vset.pattern.permute.xlu0 0
        %1274 = vperm.xlu0 %1273, %v1264
        %v1275 = vpop.permute.xlu0 %1274
        %1278 = vset.pattern.permute.xlu0 0
        %1279 = vperm.xlu0 %1278, %v1265
        %v1280 = vpop.permute.xlu0 %1279
        %1283 = vset.pattern.permute.xlu0 0
        %1284 = vperm.xlu0 %1283, %v1266
        %v1285 = vpop.permute.xlu0 %1284
        %1288 = vset.pattern.permute.xlu0 0
        %1289 = vperm.xlu0 %1288, %v1267
        %v1290 = vpop.permute.xlu0 %1289
        %1293 = vset.pattern.permute.xlu0 0
        %1294 = vperm.xlu0 %1293, %v1268
        %v1295 = vpop.permute.xlu0 %1294
        %1298 = vset.pattern.permute.xlu0 0
        %1299 = vperm.xlu0 %1298, %v1269
        %v1300 = vpop.permute.xlu0 %1299
        %1303 = vset.pattern.permute.xlu0 0
        %1304 = vperm.xlu0 %1303, %v1270
        %v1305 = vpop.permute.xlu0 %1304
        %1308 = vset.pattern.permute.xlu0 0
        %1309 = vperm.xlu0 %1308, %v1271
        %v1310 = vpop.permute.xlu0 %1309
        %v1320 = vunpack.c.l.b16 %v1247
        %v1321 = vunpack.c.l.b16 %v1248
        %v1322 = vunpack.c.l.b16 %v1249
        %v1323 = vunpack.c.l.b16 %v1250
        %v1324 = vunpack.c.l.b16 %v1251
        %v1325 = vunpack.c.l.b16 %v1252
        %v1326 = vunpack.c.l.b16 %v1253
        %v1327 = vunpack.c.l.b16 %v1254
        %v1328 = vpack.c.b16 %v1321, %v1320
        %v1329 = vpack.c.b16 %v1323, %v1322
        %v1330 = vpack.c.b16 %v1325, %v1324
        %v1331 = vpack.c.b16 %v1327, %v1326
        %v1333 = vsel %vm643, %v1328, 0
        %v1336 = vsel %vm643, %v1329, 0
        %v1339 = vsel %vm643, %v1330, 0
        %v1342 = vsel %vm643, %v1331, 0
        %1344 = vmatpush.bf16.msra.mxu0 0
        %1345 = vmatpush.bf16.msra.mxu0 0
        %1346 = vmatpush.bf16.msra.mxu0 0
        %1347 = vmatpush.bf16.msra.mxu0 0
        %1348 = vmatpush.bf16.msra.mxu0 %v1261
        %1349 = vmatpush.bf16.msra.mxu0 %v1259
        %1350 = vmatpush.bf16.msra.mxu0 %v1257
        %1351 = vmatpush.bf16.msra.mxu0 %v1255
        %1352 = vmatmul.bf16.gmra.mxu0 %v1333
        %v1353 = vpop.f32.mrf.mxu0
        %v1354 = vadd.f32 %v1275, %v1353
        %v1355 = vpop.f32.mrf.mxu0
        %v1356 = vadd.f32 %v1280, %v1355
        %1357 = vmatmul.bf16.gmra.mxu0 %v1336
        %v1358 = vpop.f32.mrf.mxu0
        %v1359 = vadd.f32 %v1285, %v1358
        %v1360 = vpop.f32.mrf.mxu0
        %v1361 = vadd.f32 %v1290, %v1360
        %1362 = vmatmul.bf16.gmra.mxu0 %v1339
        %v1363 = vpop.f32.mrf.mxu0
        %v1364 = vadd.f32 %v1295, %v1363
        %v1365 = vpop.f32.mrf.mxu0
        %v1366 = vadd.f32 %v1300, %v1365
        %1367 = vmatmul.bf16.gmra.mxu0 %v1342
        %v1368 = vpop.f32.mrf.mxu0
        %v1369 = vadd.f32 %v1305, %v1368
        %v1370 = vpop.f32.mrf.mxu0
        %v1371 = vadd.f32 %v1310, %v1370
        %1372 = vdwg.mxu0
        %1373 = vmatpush.bf16.msra.mxu0 0
        %1374 = vmatpush.bf16.msra.mxu0 0
        %1375 = vmatpush.bf16.msra.mxu0 0
        %1376 = vmatpush.bf16.msra.mxu0 0
        %1377 = vmatpush.bf16.msra.mxu0 %v1262
        %1378 = vmatpush.bf16.msra.mxu0 %v1260
        %1379 = vmatpush.bf16.msra.mxu0 %v1258
        %1380 = vmatpush.bf16.msra.mxu0 %v1256
        %1381 = vmatmul.bf16.gmra.mxu0 %v1333
        %v1382 = vpop.f32.mrf.mxu0
        %v1383 = vadd.f32 %v1275, %v1382
        %v1384 = vpop.f32.mrf.mxu0
        %v1385 = vadd.f32 %v1280, %v1384
        %1386 = vmatmul.bf16.gmra.mxu0 %v1336
        %v1387 = vpop.f32.mrf.mxu0
        %v1388 = vadd.f32 %v1285, %v1387
        %v1389 = vpop.f32.mrf.mxu0
        %v1390 = vadd.f32 %v1290, %v1389
        %1391 = vmatmul.bf16.gmra.mxu0 %v1339
        %v1392 = vpop.f32.mrf.mxu0
        %v1393 = vadd.f32 %v1295, %v1392
        %v1394 = vpop.f32.mrf.mxu0
        %v1395 = vadd.f32 %v1300, %v1394
        %1396 = vmatmul.bf16.gmra.mxu0 %v1342
        %v1397 = vpop.f32.mrf.mxu0
        %v1398 = vadd.f32 %v1305, %v1397
        %v1399 = vpop.f32.mrf.mxu0
        %v1400 = vadd.f32 %v1310, %v1399
        %1401 = vdwg.mxu0
        %v1402 = vtanh.pop %v1354
        %v1403 = vtanh.pop %v1383
        %v1404 = vtanh.pop %v1356
        %v1405 = vtanh.pop %v1385
        %v1406 = vtanh.pop %v1359
        %v1407 = vtanh.pop %v1388
        %v1408 = vtanh.pop %v1361
        %v1409 = vtanh.pop %v1390
        %v1410 = vtanh.pop %v1364
        %v1411 = vtanh.pop %v1393
        %v1412 = vtanh.pop %v1366
        %v1413 = vtanh.pop %v1395
        %v1414 = vtanh.pop %v1369
        %v1415 = vtanh.pop %v1398
        %v1416 = vtanh.pop %v1371
        %v1417 = vtanh.pop %v1400
        %s1418 = scalar_lea.vmem %s3, 160
        %v1419 = vld [vmem:[%s1418] sm:$0xf]
        %v1420 = vld [vmem:[%s1418 + $0x4] sm:$0xf]
        %v1421 = vld [vmem:[%s1418 + $0x8] sm:$0xf]
        %v1422 = vld [vmem:[%s1418 + $0xc] sm:$0xf]
        %v1423 = vld [vmem:[%s1418 + $0x10] sm:$0xf]
        %v1424 = vld [vmem:[%s1418 + $0x14] sm:$0xf]
        %v1425 = vld [vmem:[%s1418 + $0x18] sm:$0xf]
        %v1426 = vld [vmem:[%s1418 + $0x1c] sm:$0xf]
        %v1427 = vpack.c.bf16 %v1404, %v1402
        %v1428 = vpack.c.bf16 %v1405, %v1403
        %v1429 = vpack.c.bf16 %v1408, %v1406
        %v1430 = vpack.c.bf16 %v1409, %v1407
        %v1431 = vpack.c.bf16 %v1412, %v1410
        %v1432 = vpack.c.bf16 %v1413, %v1411
        %v1433 = vpack.c.bf16 %v1416, %v1414
        %v1434 = vpack.c.bf16 %v1417, %v1415
        %s1435 = scalar_lea.vmem %s4, 320
        %v1436 = vld [vmem:[%s1435] sm:$0xff]
        %v1437 = vld [vmem:[%s1435 + $0x8] sm:$0xff]
        %v1438 = vld [vmem:[%s1435 + $0x10] sm:$0xff]
        %v1439 = vld [vmem:[%s1435 + $0x18] sm:$0xff]
        %v1440 = vld [vmem:[%s1435 + $0x20] sm:$0xff]
        %v1441 = vld [vmem:[%s1435 + $0x28] sm:$0xff]
        %v1442 = vld [vmem:[%s1435 + $0x30] sm:$0xff]
        %v1443 = vld [vmem:[%s1435 + $0x38] sm:$0xff]
        %1445 = vset.pattern.permute.xlu0 0
        %1446 = vperm.xlu0 %1445, %v1436
        %v1447 = vpop.permute.xlu0 %1446
        %1450 = vset.pattern.permute.xlu0 0
        %1451 = vperm.xlu0 %1450, %v1437
        %v1452 = vpop.permute.xlu0 %1451
        %1455 = vset.pattern.permute.xlu0 0
        %1456 = vperm.xlu0 %1455, %v1438
        %v1457 = vpop.permute.xlu0 %1456
        %1460 = vset.pattern.permute.xlu0 0
        %1461 = vperm.xlu0 %1460, %v1439
        %v1462 = vpop.permute.xlu0 %1461
        %1465 = vset.pattern.permute.xlu0 0
        %1466 = vperm.xlu0 %1465, %v1440
        %v1467 = vpop.permute.xlu0 %1466
        %1470 = vset.pattern.permute.xlu0 0
        %1471 = vperm.xlu0 %1470, %v1441
        %v1472 = vpop.permute.xlu0 %1471
        %1475 = vset.pattern.permute.xlu0 0
        %1476 = vperm.xlu0 %1475, %v1442
        %v1477 = vpop.permute.xlu0 %1476
        %1480 = vset.pattern.permute.xlu0 0
        %1481 = vperm.xlu0 %1480, %v1443
        %v1482 = vpop.permute.xlu0 %1481
        %v1492 = vunpack.c.l.b16 %v1419
        %v1493 = vunpack.c.l.b16 %v1420
        %v1494 = vunpack.c.l.b16 %v1421
        %v1495 = vunpack.c.l.b16 %v1422
        %v1496 = vunpack.c.l.b16 %v1423
        %v1497 = vunpack.c.l.b16 %v1424
        %v1498 = vunpack.c.l.b16 %v1425
        %v1499 = vunpack.c.l.b16 %v1426
        %v1500 = vpack.c.b16 %v1493, %v1492
        %v1501 = vpack.c.b16 %v1495, %v1494
        %v1502 = vpack.c.b16 %v1497, %v1496
        %v1503 = vpack.c.b16 %v1499, %v1498
        %v1505 = vsel %vm643, %v1500, 0
        %v1508 = vsel %vm643, %v1501, 0
        %v1511 = vsel %vm643, %v1502, 0
        %v1514 = vsel %vm643, %v1503, 0
        %1516 = vmatpush.bf16.msra.mxu0 0
        %1517 = vmatpush.bf16.msra.mxu0 0
        %1518 = vmatpush.bf16.msra.mxu0 0
        %1519 = vmatpush.bf16.msra.mxu0 0
        %1520 = vmatpush.bf16.msra.mxu0 %v1433
        %1521 = vmatpush.bf16.msra.mxu0 %v1431
        %1522 = vmatpush.bf16.msra.mxu0 %v1429
        %1523 = vmatpush.bf16.msra.mxu0 %v1427
        %1524 = vmatmul.bf16.gmra.mxu0 %v1505
        %v1525 = vpop.f32.mrf.mxu0
        %v1526 = vadd.f32 %v1447, %v1525
        %v1527 = vpop.f32.mrf.mxu0
        %v1528 = vadd.f32 %v1452, %v1527
        %1529 = vmatmul.bf16.gmra.mxu0 %v1508
        %v1530 = vpop.f32.mrf.mxu0
        %v1531 = vadd.f32 %v1457, %v1530
        %v1532 = vpop.f32.mrf.mxu0
        %v1533 = vadd.f32 %v1462, %v1532
        %1534 = vmatmul.bf16.gmra.mxu0 %v1511
        %v1535 = vpop.f32.mrf.mxu0
        %v1536 = vadd.f32 %v1467, %v1535
        %v1537 = vpop.f32.mrf.mxu0
        %v1538 = vadd.f32 %v1472, %v1537
        %1539 = vmatmul.bf16.gmra.mxu0 %v1514
        %v1540 = vpop.f32.mrf.mxu0
        %v1541 = vadd.f32 %v1477, %v1540
        %v1542 = vpop.f32.mrf.mxu0
        %v1543 = vadd.f32 %v1482, %v1542
        %1544 = vdwg.mxu0
        %1545 = vmatpush.bf16.msra.mxu0 0
        %1546 = vmatpush.bf16.msra.mxu0 0
        %1547 = vmatpush.bf16.msra.mxu0 0
        %1548 = vmatpush.bf16.msra.mxu0 0
        %1549 = vmatpush.bf16.msra.mxu0 %v1434
        %1550 = vmatpush.bf16.msra.mxu0 %v1432
        %1551 = vmatpush.bf16.msra.mxu0 %v1430
        %1552 = vmatpush.bf16.msra.mxu0 %v1428
        %1553 = vmatmul.bf16.gmra.mxu0 %v1505
        %v1554 = vpop.f32.mrf.mxu0
        %v1555 = vadd.f32 %v1447, %v1554
        %v1556 = vpop.f32.mrf.mxu0
        %v1557 = vadd.f32 %v1452, %v1556
        %1558 = vmatmul.bf16.gmra.mxu0 %v1508
        %v1559 = vpop.f32.mrf.mxu0
        %v1560 = vadd.f32 %v1457, %v1559
        %v1561 = vpop.f32.mrf.mxu0
        %v1562 = vadd.f32 %v1462, %v1561
        %1563 = vmatmul.bf16.gmra.mxu0 %v1511
        %v1564 = vpop.f32.mrf.mxu0
        %v1565 = vadd.f32 %v1467, %v1564
        %v1566 = vpop.f32.mrf.mxu0
        %v1567 = vadd.f32 %v1472, %v1566
        %1568 = vmatmul.bf16.gmra.mxu0 %v1514
        %v1569 = vpop.f32.mrf.mxu0
        %v1570 = vadd.f32 %v1477, %v1569
        %v1571 = vpop.f32.mrf.mxu0
        %v1572 = vadd.f32 %v1482, %v1571
        %1573 = vdwg.mxu0
        %v1574 = vtanh.pop %v1526
        %v1575 = vtanh.pop %v1555
        %v1576 = vtanh.pop %v1528
        %v1577 = vtanh.pop %v1557
        %v1578 = vtanh.pop %v1531
        %v1579 = vtanh.pop %v1560
        %v1580 = vtanh.pop %v1533
        %v1581 = vtanh.pop %v1562
        %v1582 = vtanh.pop %v1536
        %v1583 = vtanh.pop %v1565
        %v1584 = vtanh.pop %v1538
        %v1585 = vtanh.pop %v1567
        %v1586 = vtanh.pop %v1541
        %v1587 = vtanh.pop %v1570
        %v1588 = vtanh.pop %v1543
        %v1589 = vtanh.pop %v1572
        %s1590 = scalar_lea.vmem %s3, 192
        %v1591 = vld [vmem:[%s1590] sm:$0xf]
        %v1592 = vld [vmem:[%s1590 + $0x4] sm:$0xf]
        %v1593 = vld [vmem:[%s1590 + $0x8] sm:$0xf]
        %v1594 = vld [vmem:[%s1590 + $0xc] sm:$0xf]
        %v1595 = vld [vmem:[%s1590 + $0x10] sm:$0xf]
        %v1596 = vld [vmem:[%s1590 + $0x14] sm:$0xf]
        %v1597 = vld [vmem:[%s1590 + $0x18] sm:$0xf]
        %v1598 = vld [vmem:[%s1590 + $0x1c] sm:$0xf]
        %v1599 = vpack.c.bf16 %v1576, %v1574
        %v1600 = vpack.c.bf16 %v1577, %v1575
        %v1601 = vpack.c.bf16 %v1580, %v1578
        %v1602 = vpack.c.bf16 %v1581, %v1579
        %v1603 = vpack.c.bf16 %v1584, %v1582
        %v1604 = vpack.c.bf16 %v1585, %v1583
        %v1605 = vpack.c.bf16 %v1588, %v1586
        %v1606 = vpack.c.bf16 %v1589, %v1587
        %s1607 = scalar_lea.vmem %s4, 384
        %v1608 = vld [vmem:[%s1607] sm:$0xff]
        %v1609 = vld [vmem:[%s1607 + $0x8] sm:$0xff]
        %v1610 = vld [vmem:[%s1607 + $0x10] sm:$0xff]
        %v1611 = vld [vmem:[%s1607 + $0x18] sm:$0xff]
        %v1612 = vld [vmem:[%s1607 + $0x20] sm:$0xff]
        %v1613 = vld [vmem:[%s1607 + $0x28] sm:$0xff]
        %v1614 = vld [vmem:[%s1607 + $0x30] sm:$0xff]
        %v1615 = vld [vmem:[%s1607 + $0x38] sm:$0xff]
        %1617 = vset.pattern.permute.xlu0 0
        %1618 = vperm.xlu0 %1617, %v1608
        %v1619 = vpop.permute.xlu0 %1618
        %1622 = vset.pattern.permute.xlu0 0
        %1623 = vperm.xlu0 %1622, %v1609
        %v1624 = vpop.permute.xlu0 %1623
        %1627 = vset.pattern.permute.xlu0 0
        %1628 = vperm.xlu0 %1627, %v1610
        %v1629 = vpop.permute.xlu0 %1628
        %1632 = vset.pattern.permute.xlu0 0
        %1633 = vperm.xlu0 %1632, %v1611
        %v1634 = vpop.permute.xlu0 %1633
        %1637 = vset.pattern.permute.xlu0 0
        %1638 = vperm.xlu0 %1637, %v1612
        %v1639 = vpop.permute.xlu0 %1638
        %1642 = vset.pattern.permute.xlu0 0
        %1643 = vperm.xlu0 %1642, %v1613
        %v1644 = vpop.permute.xlu0 %1643
        %1647 = vset.pattern.permute.xlu0 0
        %1648 = vperm.xlu0 %1647, %v1614
        %v1649 = vpop.permute.xlu0 %1648
        %1652 = vset.pattern.permute.xlu0 0
        %1653 = vperm.xlu0 %1652, %v1615
        %v1654 = vpop.permute.xlu0 %1653
        %v1664 = vunpack.c.l.b16 %v1591
        %v1665 = vunpack.c.l.b16 %v1592
        %v1666 = vunpack.c.l.b16 %v1593
        %v1667 = vunpack.c.l.b16 %v1594
        %v1668 = vunpack.c.l.b16 %v1595
        %v1669 = vunpack.c.l.b16 %v1596
        %v1670 = vunpack.c.l.b16 %v1597
        %v1671 = vunpack.c.l.b16 %v1598
        %v1672 = vpack.c.b16 %v1665, %v1664
        %v1673 = vpack.c.b16 %v1667, %v1666
        %v1674 = vpack.c.b16 %v1669, %v1668
        %v1675 = vpack.c.b16 %v1671, %v1670
        %v1677 = vsel %vm643, %v1672, 0
        %v1680 = vsel %vm643, %v1673, 0
        %v1683 = vsel %vm643, %v1674, 0
        %v1686 = vsel %vm643, %v1675, 0
        %1688 = vmatpush.bf16.msra.mxu0 0
        %1689 = vmatpush.bf16.msra.mxu0 0
        %1690 = vmatpush.bf16.msra.mxu0 0
        %1691 = vmatpush.bf16.msra.mxu0 0
        %1692 = vmatpush.bf16.msra.mxu0 %v1605
        %1693 = vmatpush.bf16.msra.mxu0 %v1603
        %1694 = vmatpush.bf16.msra.mxu0 %v1601
        %1695 = vmatpush.bf16.msra.mxu0 %v1599
        %1696 = vmatmul.bf16.gmra.mxu0 %v1677
        %v1697 = vpop.f32.mrf.mxu0
        %v1698 = vadd.f32 %v1619, %v1697
        %v1699 = vpop.f32.mrf.mxu0
        %v1700 = vadd.f32 %v1624, %v1699
        %1701 = vmatmul.bf16.gmra.mxu0 %v1680
        %v1702 = vpop.f32.mrf.mxu0
        %v1703 = vadd.f32 %v1629, %v1702
        %v1704 = vpop.f32.mrf.mxu0
        %v1705 = vadd.f32 %v1634, %v1704
        %1706 = vmatmul.bf16.gmra.mxu0 %v1683
        %v1707 = vpop.f32.mrf.mxu0
        %v1708 = vadd.f32 %v1639, %v1707
        %v1709 = vpop.f32.mrf.mxu0
        %v1710 = vadd.f32 %v1644, %v1709
        %1711 = vmatmul.bf16.gmra.mxu0 %v1686
        %v1712 = vpop.f32.mrf.mxu0
        %v1713 = vadd.f32 %v1649, %v1712
        %v1714 = vpop.f32.mrf.mxu0
        %v1715 = vadd.f32 %v1654, %v1714
        %1716 = vdwg.mxu0
        %1717 = vmatpush.bf16.msra.mxu0 0
        %1718 = vmatpush.bf16.msra.mxu0 0
        %1719 = vmatpush.bf16.msra.mxu0 0
        %1720 = vmatpush.bf16.msra.mxu0 0
        %1721 = vmatpush.bf16.msra.mxu0 %v1606
        %1722 = vmatpush.bf16.msra.mxu0 %v1604
        %1723 = vmatpush.bf16.msra.mxu0 %v1602
        %1724 = vmatpush.bf16.msra.mxu0 %v1600
        %1725 = vmatmul.bf16.gmra.mxu0 %v1677
        %v1726 = vpop.f32.mrf.mxu0
        %v1727 = vadd.f32 %v1619, %v1726
        %v1728 = vpop.f32.mrf.mxu0
        %v1729 = vadd.f32 %v1624, %v1728
        %1730 = vmatmul.bf16.gmra.mxu0 %v1680
        %v1731 = vpop.f32.mrf.mxu0
        %v1732 = vadd.f32 %v1629, %v1731
        %v1733 = vpop.f32.mrf.mxu0
        %v1734 = vadd.f32 %v1634, %v1733
        %1735 = vmatmul.bf16.gmra.mxu0 %v1683
        %v1736 = vpop.f32.mrf.mxu0
        %v1737 = vadd.f32 %v1639, %v1736
        %v1738 = vpop.f32.mrf.mxu0
        %v1739 = vadd.f32 %v1644, %v1738
        %1740 = vmatmul.bf16.gmra.mxu0 %v1686
        %v1741 = vpop.f32.mrf.mxu0
        %v1742 = vadd.f32 %v1649, %v1741
        %v1743 = vpop.f32.mrf.mxu0
        %v1744 = vadd.f32 %v1654, %v1743
        %1745 = vdwg.mxu0
        %v1746 = vtanh.pop %v1698
        %v1747 = vtanh.pop %v1727
        %v1748 = vtanh.pop %v1700
        %v1749 = vtanh.pop %v1729
        %v1750 = vtanh.pop %v1703
        %v1751 = vtanh.pop %v1732
        %v1752 = vtanh.pop %v1705
        %v1753 = vtanh.pop %v1734
        %v1754 = vtanh.pop %v1708
        %v1755 = vtanh.pop %v1737
        %v1756 = vtanh.pop %v1710
        %v1757 = vtanh.pop %v1739
        %v1758 = vtanh.pop %v1713
        %v1759 = vtanh.pop %v1742
        %v1760 = vtanh.pop %v1715
        %v1761 = vtanh.pop %v1744
        %v1762 = vld [vmem:[%s5] sm:$0xff]
        %v1763 = vld [vmem:[%s5 + $0x8] sm:$0xff]
        %v1764 = vld [vmem:[%s5 + $0x10] sm:$0xff]
        %v1765 = vld [vmem:[%s5 + $0x18] sm:$0xff]
        %v1766 = vld [vmem:[%s5 + $0x20] sm:$0xff]
        %v1767 = vld [vmem:[%s5 + $0x28] sm:$0xff]
        %v1768 = vld [vmem:[%s5 + $0x30] sm:$0xff]
        %v1769 = vld [vmem:[%s5 + $0x38] sm:$0xff]
        %1771 = vset.pattern.permute.xlu0 0
        %1772 = vperm.xlu0 %1771, %v1762
        %v1773 = vpop.permute.xlu0 %1772
        %1776 = vset.pattern.permute.xlu0 0
        %1777 = vperm.xlu0 %1776, %v1763
        %v1778 = vpop.permute.xlu0 %1777
        %1781 = vset.pattern.permute.xlu0 0
        %1782 = vperm.xlu0 %1781, %v1764
        %v1783 = vpop.permute.xlu0 %1782
        %1786 = vset.pattern.permute.xlu0 0
        %1787 = vperm.xlu0 %1786, %v1765
        %v1788 = vpop.permute.xlu0 %1787
        %1791 = vset.pattern.permute.xlu0 0
        %1792 = vperm.xlu0 %1791, %v1766
        %v1793 = vpop.permute.xlu0 %1792
        %1796 = vset.pattern.permute.xlu0 0
        %1797 = vperm.xlu0 %1796, %v1767
        %v1798 = vpop.permute.xlu0 %1797
        %1801 = vset.pattern.permute.xlu0 0
        %1802 = vperm.xlu0 %1801, %v1768
        %v1803 = vpop.permute.xlu0 %1802
        %1806 = vset.pattern.permute.xlu0 0
        %1807 = vperm.xlu0 %1806, %v1769
        %v1808 = vpop.permute.xlu0 %1807
        %v1810 = vmul.f32 %v1773, %v1746
        %v1811 = vmul.f32 %v1773, %v1747
        %v1812 = vmul.f32 %v1778, %v1748
        %v1813 = vmul.f32 %v1778, %v1749
        %v1814 = vmul.f32 %v1783, %v1750
        %v1815 = vmul.f32 %v1783, %v1751
        %v1816 = vmul.f32 %v1788, %v1752
        %v1817 = vmul.f32 %v1788, %v1753
        %v1818 = vmul.f32 %v1793, %v1754
        %v1819 = vmul.f32 %v1793, %v1755
        %v1820 = vmul.f32 %v1798, %v1756
        %v1821 = vmul.f32 %v1798, %v1757
        %v1822 = vmul.f32 %v1803, %v1758
        %v1823 = vmul.f32 %v1803, %v1759
        %v1824 = vmul.f32 %v1808, %v1760
        %v1825 = vmul.f32 %v1808, %v1761
        %v1826 = vadd.f32 %v1810, %v1812
        %v1827 = vadd.f32 %v1826, %v1814
        %v1828 = vadd.f32 %v1827, %v1816
        %v1829 = vadd.f32 %v1828, %v1818
        %v1830 = vadd.f32 %v1829, %v1820
        %v1831 = vadd.f32 %v1830, %v1822
        %v1832 = vadd.f32 %v1831, %v1824
        %v1833 = vrot.slane %v1832, 4
        %v1834 = vadd.f32 %v1832, %v1833
        %v1835 = vrot.slane %v1834, 2
        %v1836 = vadd.f32 %v1834, %v1835
        %v1837 = vrot.slane %v1836, 1
        %v1838 = vadd.f32 %v1836, %v1837
        %v1839 = vadd.f32 %v1811, %v1813
        %v1840 = vadd.f32 %v1839, %v1815
        %v1841 = vadd.f32 %v1840, %v1817
        %v1842 = vadd.f32 %v1841, %v1819
        %v1843 = vadd.f32 %v1842, %v1821
        %v1844 = vadd.f32 %v1843, %v1823
        %v1845 = vadd.f32 %v1844, %v1825
        %v1846 = vrot.slane %v1845, 4
        %v1847 = vadd.f32 %v1845, %v1846
        %v1848 = vrot.slane %v1847, 2
        %v1849 = vadd.f32 %v1847, %v1848
        %v1850 = vrot.slane %v1849, 1
        %v1851 = vadd.f32 %v1849, %v1850
        %v1852 = vld [vmem:[#allocation2] sm:$0x1]
        %1854 = vset.pattern.permute.xlu0 0
        %1855 = vperm.xlu0 %1854, %v1852
        %v1856 = vpop.permute.xlu0 %1855
        %v1858 = vperm.slane %v1856, 0
        %v1859 = vadd.f32 %v1838, %v1858
        %v1860 = vadd.f32 %v1851, %v1858
        %v1863 = vrot.slane %v1860, 7
        %vm1864 = vcmask 1040384
        %v1865 = vsel %vm1864, %v1859, %v1863
        %v1867 = vlaneseq
        %vm1868 = vcmp.ge.s32.totalorder %v1867, 0
        %vm1869 = vcmp.lt.s32.totalorder %v1867, 256
        %vm1870 = vmand %vm1868, %vm1869
        %1871 = vst.msk [vmem:[%s274] sm:$0x3] %vm1870, %v1865
        %s1872 = sand.u32 %s183, 1
        %s1873 = scalar_lea.sflag [#allocation4], %s1872
        %s1874 = sand.u32 %s183, 1
        %s1875 = smul.addr %s1874, 2
        %s1876 = scalar_lea.vmem [#allocation3], %s1875
        // Predicated region
        $region49: #{_wave_apply.1} parent=47 // pred_check
          %p1877 = pneg %p193
        $region50: #{_wave_apply.1} parent=47 // pred_check_branch
          %1879 = sbr.rel (%p1877) target = $region52
        $region51: #{_wave_apply.1} parent=47 // pred_region
          %s1880 = smul.u32 2, %s23
          %1882 = vsyncadd %s1873, 0
          %s1883 = scalar_lea.hbm %s7, %s1880
          %s1885 = sshll.u32 %s1876, 4
          %s1886 = int_to_ptr.vmem [resolvable:$true] %s1885
          %s1887 = sshll.u32 %s1883, 4
          %s1888 = int_to_ptr.hbm [resolvable:$true] %s1887
          %1890 = dma.vmem_to_hbm [thread:$0]  %s1886, 32, %s1888, %s1873
        $region52: #{_wave_apply.1} parent=47 // pred_fallthru
          _
      $region48: #{_wave_apply.1} parent=5 // pred_fallthru
        _
      %p1891 = scmp.le.s32.totalorder 2, %s18
      // Predicated region
      $region53: #{_wave_apply.1} parent=5 // pred_check
        %p1892 = pneg %p1891
      $region54: #{_wave_apply.1} parent=5 // pred_check_branch
        %1894 = sbr.rel (%p1892) target = $region56
      $region55: #{_wave_apply.1} parent=5 // pred_region
        %s1895 = ssub.s32 %s18, 2
        // Predicated region
        $region57: #{_wave_apply.1} parent=55 // pred_check
          %p1896 = pneg %p199
        $region58: #{_wave_apply.1} parent=55 // pred_check_branch
          %1898 = sbr.rel (%p1896) target = $region60
        $region59: #{_wave_apply.1} parent=55 // pred_region
          %s1899 = sand.u32 %s184, 1
          %s1900 = scalar_lea.sflag [#allocation4], %s1899
          %s1901 = sand.u32 %s184, 1
          %s1902 = smul.addr %s1901, 2
          %s1903 = scalar_lea.vmem [#allocation3], %s1902
          %1905 = dma.done %s1900, 32
        $region60: #{_wave_apply.1} parent=55 // pred_fallthru
          _
      $region56: #{_wave_apply.1} parent=5 // pred_fallthru
        _
    $region6: #{_wave_apply.1} parent=1 // loop_footer
      %s22 = sadd.s32 1, %s18
    $region7: #{_wave_apply.1} parent=1 // loop_footer_branch
      %17 = sbr.rel target = $region3
    $region8: #{_wave_apply.1} parent=1 // loop_exit
      _
    %1906 = vsyncpa [#allocation4], 1
    %s1907 = scalar_lea.sflag [#allocation4], 1
    %1908 = vsyncpa %s1907, 1

</llo_original>
